<compile_context>
chip_gen: v6e
topology: v6e:2x2x1
jax: 0.10.0
libtpu: 0.0.40
codegen_flags: <defaults>
</compile_context>

<pallas_src>
import functools
import math

import jax
import jax.numpy as jnp
from jax.experimental import pallas as pl
from jax.experimental.pallas import tpu as pltpu


# ----------------------------- config (matches nn.Module __init__ args) ------
INPUT_DIM = 4
HIDDEN_SIZE = 32
NUM_LAYERS_GRU = 1          # forward only uses the last layer's fwd/bwd hidden
DROPOUT = 0.0
BIDIRECTIONAL = True        # required: forward concatenates h[-2] and h[-1]
STATS_SIZE = 6
LAST_HIDDEN = 16
ACT_FN = "ReLU"
STABLIZE = True
BIAS_INIT = 90.0
SET_TARGET = "bias"

B = 2                       # batch
T = 8                       # max sequence length


def _activation(name, x):
    if name == "Sigmoid":
        return jax.nn.sigmoid(x)
    elif name == "Tanh":
        return jnp.tanh(x)
    elif name == "ReLU":
        return jnp.maximum(x, 0.0)
    elif name == "ELU":
        return jnp.where(x > 0, x, jnp.exp(x) - 1.0)
    else:
        raise Exception("Unprogrammed Activation Function !")


# ----------------------------------------------------------------- kernel ----
def gru_regr_kernel(
    x_ref,       # (T, B, 2*Din) f32: [x_t | x_{T-1-t}] (bwd stream time-reversed)
    mask_ref,    # (T, B, 2H)    f32: [fwd mask | bwd mask], 1.0 = valid step
    stats_ref,   # (B, S)        f32
    w_in_ref,    # (2*Din+1, 6H): block-diag W_ih (gate-interleaved) + folded gi bias row
    w_rec_ref,   # (2H+1, 6H):    block-diag W_hh + b_hn row (nonzero only in n columns)
    w_head_ref,  # (2H+S+1, LH):  fc rows (h_fwd, h_bwd, stats) + fc bias row
    w_out_ref,   # (LH+1, 1):     out weight + out bias row
    out_ref,     # (B, 1)
    *,
    hidden_size,
    input_dim,
    stats_size,
    act_fn,
    stablize,
    with_stats,
    set_target,
    target,
):
    H = hidden_size
    Din = input_dim
    S = stats_size
    Tmax, Bb, _ = x_ref.shape

    w_in = w_in_ref[...]
    w_ih = w_in[0:2 * Din, :]                    # (2Din, 6H)
    b_gi = w_in[2 * Din:2 * Din + 1, :]          # (1, 6H)  bih + bhh(r,z) folded
    w_rec = w_rec_ref[...]
    w_hh = w_rec[0:2 * H, :]                     # (2H, 6H)
    b_hn = w_rec[2 * H:2 * H + 1, :]             # (1, 6H)  only n columns nonzero
    w_head = w_head_ref[...]
    w_out = w_out_ref[...]

    # Hoisted input projections: independent of h -> off the serial chain.
    gi = [
        jnp.dot(x_ref[t], w_ih, preferred_element_type=jnp.float32) + b_gi
        for t in range(Tmax)
    ]
    masks = [mask_ref[t] for t in range(Tmax)]

    # Fused bidirectional recurrence, fully unrolled (T static & small).
    # h = [h_fwd | h_bwd]; one (B,2H)x(2H,6H) matmul per step covers both dirs.
    h = jnp.zeros((Bb, 2 * H), jnp.float32)
    for t in range(Tmax):
        gh = jnp.dot(h, w_hh, preferred_element_type=jnp.float32) + b_hn   # (B, 6H)
        # gate layout: [r_f r_b | z_f z_b | n_f n_b], each block width H
        rz = jax.nn.sigmoid(gi[t][:, 0:4 * H] + gh[:, 0:4 * H])
        r = rz[:, 0:2 * H]
        z = rz[:, 2 * H:4 * H]
        n = jnp.tanh(gi[t][:, 4 * H:6 * H] + r * gh[:, 4 * H:6 * H])
        h_new = (1.0 - z) * n + z * h
        # packed-sequence masking: update only where this timestep is valid
        h = h + masks[t] * (h_new - h)

    # FC head: cat(h_fwd, h_bwd, tanh(stats)) @ W_fc + b_fc as block matmuls.
    dense = (
        jnp.dot(h, w_head[0:2 * H, :], preferred_element_type=jnp.float32)
        + w_head[2 * H + S:2 * H + S + 1, :]
    )
    if with_stats:
        stats = stats_ref[...]
        stats_in = jnp.tanh(stats) if stablize else stats
        dense = dense + jnp.dot(
            stats_in, w_head[2 * H:2 * H + S, :],
            preferred_element_type=jnp.float32)

    act = _activation(act_fn, dense)
    if stablize:
        act = jnp.tanh(act)

    lh = w_out.shape[0] - 1
    output = (jnp.dot(act, w_out[0:lh, :], preferred_element_type=jnp.float32)
              + w_out[lh:lh + 1, :])
    if set_target == "add":
        output = output + target
    out_ref[...] = output


# ------------------------------------------------------ host-side packing ----
def _pack_inputs(batch, seq_lengths):
    """Time-major input with time-reversed copy for the backward direction,
    plus precomputed float masks (fwd: t < len, bwd: T-1-t < len)."""
    H = HIDDEN_SIZE
    x_tm = jnp.transpose(batch, (1, 0, 2)).astype(jnp.float32)      # (T, B, Din)
    x_cat = jnp.concatenate([x_tm, x_tm[::-1]], axis=-1)            # (T, B, 2Din)
    t_idx = jnp.arange(x_tm.shape[0], dtype=jnp.int32)[:, None]     # (T, 1)
    lens = seq_lengths.astype(jnp.int32)[None, :]                   # (1, B)
    m_f = (t_idx < lens).astype(jnp.float32)                        # (T, B)
    m_b = ((x_tm.shape[0] - 1 - t_idx) < lens).astype(jnp.float32)  # (T, B)
    masks = jnp.concatenate(
        [jnp.broadcast_to(m_f[:, :, None], m_f.shape + (H,)),
         jnp.broadcast_to(m_b[:, :, None], m_b.shape + (H,))], axis=-1)
    return x_cat, masks


def _pack_params(p):
    """Pack the 15 GRU/FC parameter tensors into 4 arrays (4 prologue DMAs)."""
    H, Din = HIDDEN_SIZE, INPUT_DIM

    def gates(w):  # split (rows, 3H) into (r, z, n) blocks of width H
        return w[:, 0:H], w[:, H:2 * H], w[:, 2 * H:3 * H]

    # ---- input weights, gate-interleaved block-diagonal + folded gi bias ----
    rf, zf, nf = gates(p["wih_f"])
    rb, zb, nb = gates(p["wih_b"])
    zD = jnp.zeros((Din, H), jnp.float32)
    w_ih_bd = jnp.concatenate([
        jnp.concatenate([rf, zD, zf, zD, nf, zD], axis=1),
        jnp.concatenate([zD, rb, zD, zb, zD, nb], axis=1)], axis=0)   # (2Din, 6H)

    birf, bizf, binf = gates(p["bih_f"])
    birb, bizb, binb = gates(p["bih_b"])
    bhrf, bhzf, bhnf = gates(p["bhh_f"])
    bhrb, bhzb, bhnb = gates(p["bhh_b"])
    b_gi = jnp.concatenate(
        [birf + bhrf, birb + bhrb, bizf + bhzf, bizb + bhzb, binf, binb], axis=1)
    w_in = jnp.concatenate([w_ih_bd, b_gi], axis=0)                   # (2Din+1, 6H)

    # ---- recurrent weights, block-diagonal + b_hn row (n gate only) ---------
    hrf, hzf, hnf = gates(p["whh_f"])
    hrb, hzb, hnb = gates(p["whh_b"])
    zH = jnp.zeros((H, H), jnp.float32)
    w_hh_bd = jnp.concatenate([
        jnp.concatenate([hrf, zH, hzf, zH, hnf, zH], axis=1),
        jnp.concatenate([zH, hrb, zH, hzb, zH, hnb], axis=1)], axis=0)  # (2H, 6H)
    z1 = jnp.zeros((1, H), jnp.float32)
    b_hn = jnp.concatenate([z1, z1, z1, z1, bhnf, bhnb], axis=1)        # (1, 6H)
    w_rec = jnp.concatenate([w_hh_bd, b_hn], axis=0)                    # (2H+1, 6H)

    # ---- FC head + out projection -------------------------------------------
    w_head = jnp.concatenate(
        [p["wfc_f"], p["wfc_b"], p["wfc_s"], p["bfc"]], axis=0)         # (2H+S+1, LH)
    w_out = jnp.concatenate([p["wout"], p["bout"]], axis=0)             # (LH+1, 1)
    return w_in, w_rec, w_head, w_out


# ---------------------------------------------------------------- wrapper ----
@jax.jit
def gru_regr_forward(batch, seq_lengths, statistics, params):
    """batch: (B, T, D_in) f32, seq_lengths: (B,) i32, statistics: (B, S) f32."""
    b = batch.shape[0]
    x_cat, masks = _pack_inputs(batch, seq_lengths)
    stats = statistics.reshape(b, -1).astype(jnp.float32)
    w_in, w_rec, w_head, w_out = _pack_params(params)

    kernel = functools.partial(
        gru_regr_kernel,
        hidden_size=HIDDEN_SIZE,
        input_dim=INPUT_DIM,
        stats_size=STATS_SIZE,
        act_fn=ACT_FN,
        stablize=STABLIZE,
        with_stats=STATS_SIZE > 0,
        set_target=SET_TARGET,
        target=BIAS_INIT,
    )

    operands = (x_cat, masks, stats, w_in, w_rec, w_head, w_out)
    return pl.pallas_call(
        kernel,
        out_shape=jax.ShapeDtypeStruct((b, 1), jnp.float32),
        in_specs=[pl.BlockSpec(memory_space=pltpu.MemorySpace.VMEM)] * len(operands),
        out_specs=pl.BlockSpec(memory_space=pltpu.MemorySpace.VMEM),
    )(*operands)


# ---------------------------------------------------------- params & ref -----
def init_params(key):
    """Deterministic parameter init mirroring the PyTorch module's shapes."""
    ks = jax.random.split(key, 16)
    H, Din, S, LH = HIDDEN_SIZE, INPUT_DIM, STATS_SIZE, LAST_HIDDEN

    def unif(k, shape, bound):
        return jax.random.uniform(k, shape, jnp.float32, -bound, bound)

    kg = 1.0 / math.sqrt(H)
    p = {
        # GRU layer 0, forward direction (torch weight_ih_l0 is (3H,Din); stored transposed)
        "wih_f": unif(ks[0], (Din, 3 * H), kg),
        "whh_f": unif(ks[1], (H, 3 * H), kg),
        "bih_f": unif(ks[2], (1, 3 * H), kg),
        "bhh_f": unif(ks[3], (1, 3 * H), kg),
        # GRU layer 0, reverse direction
        "wih_b": unif(ks[4], (Din, 3 * H), kg),
        "whh_b": unif(ks[5], (H, 3 * H), kg),
        "bih_b": unif(ks[6], (1, 3 * H), kg),
        "bhh_b": unif(ks[7], (1, 3 * H), kg),
    }
    # fc: Linear(2H + S -> LH); stored transposed, pre-split into blocks
    kf = 1.0 / math.sqrt(2 * H + S)
    wfc = unif(ks[8], (2 * H + S, LH), kf)
    p["wfc_f"] = wfc[0:H, :]
    p["wfc_b"] = wfc[H:2 * H, :]
    p["wfc_s"] = wfc[2 * H:, :]
    p["bfc"] = unif(ks[9], (1, LH), kf)
    # out: Linear(LH -> 1); set_target == 'bias' => bias filled with bias_init
    ko = 1.0 / math.sqrt(LH)
    p["wout"] = unif(ks[10], (LH, 1), ko)
    if SET_TARGET == "bias":
        p["bout"] = jnp.full((1, 1), BIAS_INIT, jnp.float32)
    else:
        p["bout"] = unif(ks[11], (1, 1), ko)
    return p


def gru_regr_reference(batch, seq_lengths, statistics, params):
    """Pure-JAX reference (unfused, per-direction) mirroring nn.GRU semantics."""
    H = HIDDEN_SIZE
    x = jnp.transpose(batch, (1, 0, 2)).astype(jnp.float32)
    lens = seq_lengths.astype(jnp.int32)[:, None]
    b = batch.shape[0]

    def cell(h, x_t, wih, whh, bih, bhh):
        gi = x_t @ wih + bih
        gh = h @ whh + bhh
        r = jax.nn.sigmoid(gi[:, 0:H] + gh[:, 0:H])
        z = jax.nn.sigmoid(gi[:, H:2 * H] + gh[:, H:2 * H])
        n = jnp.tanh(gi[:, 2 * H:] + r * gh[:, 2 * H:])
        return (1.0 - z) * n + z * h

    h_f = jnp.zeros((b, H), jnp.float32)
    for t in range(T):
        h_new = cell(h_f, x[t], params["wih_f"], params["whh_f"],
                     params["bih_f"], params["bhh_f"])
        h_f = jnp.where(t < lens, h_new, h_f)
    h_b = jnp.zeros((b, H), jnp.float32)
    for i in range(T):
        t = T - 1 - i
        h_new = cell(h_b, x[t], params["wih_b"], params["whh_b"],
                     params["bih_b"], params["bhh_b"])
        h_b = jnp.where(t < lens, h_new, h_b)

    stats = statistics.reshape(b, -1).astype(jnp.float32)
    stats_in = jnp.tanh(stats) if STABLIZE else stats
    hidden = jnp.concatenate([h_f, h_b, stats_in], axis=1)
    wfc = jnp.concatenate(
        [params["wfc_f"], params["wfc_b"], params["wfc_s"]], axis=0)
    dense = hidden @ wfc + params["bfc"]
    act = _activation(ACT_FN, dense)
    if STABLIZE:
        act = jnp.tanh(act)
    out = act @ params["wout"] + params["bout"]
    if SET_TARGET == "add":
        out = out + BIAS_INIT
    return out


if __name__ == "__main__":
    key = jax.random.PRNGKey(0)
    k_param, k_x, k_s = jax.random.split(key, 3)

    params = init_params(k_param)

    batch = jax.random.normal(k_x, (B, T, INPUT_DIM), jnp.float32)
    seq_lengths = jnp.array([T, 5], jnp.int32)      # variable lengths (packed-seq semantics)
    statistics = jax.random.normal(k_s, (B, STATS_SIZE), jnp.float32)

    out = gru_regr_forward(batch, seq_lengths, statistics, params)
    out = jax.block_until_ready(out)
    assert out.shape == (B, 1)

    ref = gru_regr_reference(batch, seq_lengths, statistics, params)
    assert jnp.allclose(out, ref, rtol=1e-4, atol=2e-3), (out, ref)
    print("KERNEL_OK")
</pallas_src>

<mosaic_0001>
module attributes {stable_mosaic.version = 11 : i64} {
  func.func @gru_regr_kernel(%arg0: memref<8x2x8xf32, #tpu.memory_space<vmem>>, %arg1: memref<8x2x64xf32, #tpu.memory_space<vmem>>, %arg2: memref<2x6xf32, #tpu.memory_space<vmem>>, %arg3: memref<9x192xf32, #tpu.memory_space<vmem>>, %arg4: memref<65x192xf32, #tpu.memory_space<vmem>>, %arg5: memref<71x16xf32, #tpu.memory_space<vmem>>, %arg6: memref<17x1xf32, #tpu.memory_space<vmem>>, %arg7: memref<2x1xf32, #tpu.memory_space<vmem>>) attributes {dimension_semantics = [], scalar_prefetch = 0 : i64, scratch_operands = 0 : i64, tpu.core_type = #tpu.core_type<tc>} {
    %c0 = arith.constant 0 : index
    %c0_0 = arith.constant 0 : index
    %0 = vector.load %arg3[%c0, %c0_0] : memref<9x192xf32, #tpu.memory_space<vmem>>, vector<9x192xf32>
    %1 = vector.extract_strided_slice %0 {offsets = [0, 0], sizes = [8, 192], strides = [1, 1]} : vector<9x192xf32> to vector<8x192xf32>
    %2 = vector.extract_strided_slice %0 {offsets = [8, 0], sizes = [1, 192], strides = [1, 1]} : vector<9x192xf32> to vector<1x192xf32>
    %c0_1 = arith.constant 0 : index
    %c0_2 = arith.constant 0 : index
    %3 = vector.load %arg4[%c0_1, %c0_2] : memref<65x192xf32, #tpu.memory_space<vmem>>, vector<65x192xf32>
    %4 = vector.extract_strided_slice %3 {offsets = [0, 0], sizes = [64, 192], strides = [1, 1]} : vector<65x192xf32> to vector<64x192xf32>
    %5 = vector.extract_strided_slice %3 {offsets = [64, 0], sizes = [1, 192], strides = [1, 1]} : vector<65x192xf32> to vector<1x192xf32>
    %c0_3 = arith.constant 0 : index
    %c0_4 = arith.constant 0 : index
    %6 = vector.load %arg5[%c0_3, %c0_4] : memref<71x16xf32, #tpu.memory_space<vmem>>, vector<71x16xf32>
    %c0_5 = arith.constant 0 : index
    %c0_6 = arith.constant 0 : index
    %7 = vector.load %arg6[%c0_5, %c0_6] : memref<17x1xf32, #tpu.memory_space<vmem>>, vector<17x1xf32>
    %c0_7 = arith.constant 0 : index
    %c0_8 = arith.constant 0 : index
    %c0_9 = arith.constant 0 : index
    %8 = vector.load %arg0[%c0_7, %c0_8, %c0_9] : memref<8x2x8xf32, #tpu.memory_space<vmem>>, vector<1x2x8xf32>
    %9 = vector.shape_cast %8 : vector<1x2x8xf32> to vector<2x8xf32>
    %cst = arith.constant dense<0.000000e+00> : vector<2x192xf32>
    %10 = tpu.matmul %9, %1, %cst {dimension_numbers = #tpu.dot_dimension_numbers<[1], [0], [0], [1], [0, 0, 1, 1], [], []>} : vector<2x8xf32>, vector<8x192xf32>, vector<2x192xf32> -> vector<2x192xf32>
    %11 = vector.broadcast %2 : vector<1x192xf32> to vector<2x192xf32>
    %12 = arith.addf %10, %11 : vector<2x192xf32>
    %c1 = arith.constant 1 : index
    %c0_10 = arith.constant 0 : index
    %c0_11 = arith.constant 0 : index
    %13 = vector.load %arg0[%c1, %c0_10, %c0_11] : memref<8x2x8xf32, #tpu.memory_space<vmem>>, vector<1x2x8xf32>
    %14 = vector.shape_cast %13 : vector<1x2x8xf32> to vector<2x8xf32>
    %cst_12 = arith.constant dense<0.000000e+00> : vector<2x192xf32>
    %15 = tpu.matmul %14, %1, %cst_12 {dimension_numbers = #tpu.dot_dimension_numbers<[1], [0], [0], [1], [0, 0, 1, 1], [], []>} : vector<2x8xf32>, vector<8x192xf32>, vector<2x192xf32> -> vector<2x192xf32>
    %16 = vector.broadcast %2 : vector<1x192xf32> to vector<2x192xf32>
    %17 = arith.addf %15, %16 : vector<2x192xf32>
    %c2 = arith.constant 2 : index
    %c0_13 = arith.constant 0 : index
    %c0_14 = arith.constant 0 : index
    %18 = vector.load %arg0[%c2, %c0_13, %c0_14] : memref<8x2x8xf32, #tpu.memory_space<vmem>>, vector<1x2x8xf32>
    %19 = vector.shape_cast %18 : vector<1x2x8xf32> to vector<2x8xf32>
    %cst_15 = arith.constant dense<0.000000e+00> : vector<2x192xf32>
    %20 = tpu.matmul %19, %1, %cst_15 {dimension_numbers = #tpu.dot_dimension_numbers<[1], [0], [0], [1], [0, 0, 1, 1], [], []>} : vector<2x8xf32>, vector<8x192xf32>, vector<2x192xf32> -> vector<2x192xf32>
    %21 = vector.broadcast %2 : vector<1x192xf32> to vector<2x192xf32>
    %22 = arith.addf %20, %21 : vector<2x192xf32>
    %c3 = arith.constant 3 : index
    %c0_16 = arith.constant 0 : index
    %c0_17 = arith.constant 0 : index
    %23 = vector.load %arg0[%c3, %c0_16, %c0_17] : memref<8x2x8xf32, #tpu.memory_space<vmem>>, vector<1x2x8xf32>
    %24 = vector.shape_cast %23 : vector<1x2x8xf32> to vector<2x8xf32>
    %cst_18 = arith.constant dense<0.000000e+00> : vector<2x192xf32>
    %25 = tpu.matmul %24, %1, %cst_18 {dimension_numbers = #tpu.dot_dimension_numbers<[1], [0], [0], [1], [0, 0, 1, 1], [], []>} : vector<2x8xf32>, vector<8x192xf32>, vector<2x192xf32> -> vector<2x192xf32>
    %26 = vector.broadcast %2 : vector<1x192xf32> to vector<2x192xf32>
    %27 = arith.addf %25, %26 : vector<2x192xf32>
    %c4 = arith.constant 4 : index
    %c0_19 = arith.constant 0 : index
    %c0_20 = arith.constant 0 : index
    %28 = vector.load %arg0[%c4, %c0_19, %c0_20] : memref<8x2x8xf32, #tpu.memory_space<vmem>>, vector<1x2x8xf32>
    %29 = vector.shape_cast %28 : vector<1x2x8xf32> to vector<2x8xf32>
    %cst_21 = arith.constant dense<0.000000e+00> : vector<2x192xf32>
    %30 = tpu.matmul %29, %1, %cst_21 {dimension_numbers = #tpu.dot_dimension_numbers<[1], [0], [0], [1], [0, 0, 1, 1], [], []>} : vector<2x8xf32>, vector<8x192xf32>, vector<2x192xf32> -> vector<2x192xf32>
    %31 = vector.broadcast %2 : vector<1x192xf32> to vector<2x192xf32>
    %32 = arith.addf %30, %31 : vector<2x192xf32>
    %c5 = arith.constant 5 : index
    %c0_22 = arith.constant 0 : index
    %c0_23 = arith.constant 0 : index
    %33 = vector.load %arg0[%c5, %c0_22, %c0_23] : memref<8x2x8xf32, #tpu.memory_space<vmem>>, vector<1x2x8xf32>
    %34 = vector.shape_cast %33 : vector<1x2x8xf32> to vector<2x8xf32>
    %cst_24 = arith.constant dense<0.000000e+00> : vector<2x192xf32>
    %35 = tpu.matmul %34, %1, %cst_24 {dimension_numbers = #tpu.dot_dimension_numbers<[1], [0], [0], [1], [0, 0, 1, 1], [], []>} : vector<2x8xf32>, vector<8x192xf32>, vector<2x192xf32> -> vector<2x192xf32>
    %36 = vector.broadcast %2 : vector<1x192xf32> to vector<2x192xf32>
    %37 = arith.addf %35, %36 : vector<2x192xf32>
    %c6 = arith.constant 6 : index
    %c0_25 = arith.constant 0 : index
    %c0_26 = arith.constant 0 : index
    %38 = vector.load %arg0[%c6, %c0_25, %c0_26] : memref<8x2x8xf32, #tpu.memory_space<vmem>>, vector<1x2x8xf32>
    %39 = vector.shape_cast %38 : vector<1x2x8xf32> to vector<2x8xf32>
    %cst_27 = arith.constant dense<0.000000e+00> : vector<2x192xf32>
    %40 = tpu.matmul %39, %1, %cst_27 {dimension_numbers = #tpu.dot_dimension_numbers<[1], [0], [0], [1], [0, 0, 1, 1], [], []>} : vector<2x8xf32>, vector<8x192xf32>, vector<2x192xf32> -> vector<2x192xf32>
    %41 = vector.broadcast %2 : vector<1x192xf32> to vector<2x192xf32>
    %42 = arith.addf %40, %41 : vector<2x192xf32>
    %c7 = arith.constant 7 : index
    %c0_28 = arith.constant 0 : index
    %c0_29 = arith.constant 0 : index
    %43 = vector.load %arg0[%c7, %c0_28, %c0_29] : memref<8x2x8xf32, #tpu.memory_space<vmem>>, vector<1x2x8xf32>
    %44 = vector.shape_cast %43 : vector<1x2x8xf32> to vector<2x8xf32>
    %cst_30 = arith.constant dense<0.000000e+00> : vector<2x192xf32>
    %45 = tpu.matmul %44, %1, %cst_30 {dimension_numbers = #tpu.dot_dimension_numbers<[1], [0], [0], [1], [0, 0, 1, 1], [], []>} : vector<2x8xf32>, vector<8x192xf32>, vector<2x192xf32> -> vector<2x192xf32>
    %46 = vector.broadcast %2 : vector<1x192xf32> to vector<2x192xf32>
    %47 = arith.addf %45, %46 : vector<2x192xf32>
    %c0_31 = arith.constant 0 : index
    %c0_32 = arith.constant 0 : index
    %c0_33 = arith.constant 0 : index
    %48 = vector.load %arg1[%c0_31, %c0_32, %c0_33] : memref<8x2x64xf32, #tpu.memory_space<vmem>>, vector<1x2x64xf32>
    %49 = vector.shape_cast %48 : vector<1x2x64xf32> to vector<2x64xf32>
    %c1_34 = arith.constant 1 : index
    %c0_35 = arith.constant 0 : index
    %c0_36 = arith.constant 0 : index
    %50 = vector.load %arg1[%c1_34, %c0_35, %c0_36] : memref<8x2x64xf32, #tpu.memory_space<vmem>>, vector<1x2x64xf32>
    %51 = vector.shape_cast %50 : vector<1x2x64xf32> to vector<2x64xf32>
    %c2_37 = arith.constant 2 : index
    %c0_38 = arith.constant 0 : index
    %c0_39 = arith.constant 0 : index
    %52 = vector.load %arg1[%c2_37, %c0_38, %c0_39] : memref<8x2x64xf32, #tpu.memory_space<vmem>>, vector<1x2x64xf32>
    %53 = vector.shape_cast %52 : vector<1x2x64xf32> to vector<2x64xf32>
    %c3_40 = arith.constant 3 : index
    %c0_41 = arith.constant 0 : index
    %c0_42 = arith.constant 0 : index
    %54 = vector.load %arg1[%c3_40, %c0_41, %c0_42] : memref<8x2x64xf32, #tpu.memory_space<vmem>>, vector<1x2x64xf32>
    %55 = vector.shape_cast %54 : vector<1x2x64xf32> to vector<2x64xf32>
    %c4_43 = arith.constant 4 : index
    %c0_44 = arith.constant 0 : index
    %c0_45 = arith.constant 0 : index
    %56 = vector.load %arg1[%c4_43, %c0_44, %c0_45] : memref<8x2x64xf32, #tpu.memory_space<vmem>>, vector<1x2x64xf32>
    %57 = vector.shape_cast %56 : vector<1x2x64xf32> to vector<2x64xf32>
    %c5_46 = arith.constant 5 : index
    %c0_47 = arith.constant 0 : index
    %c0_48 = arith.constant 0 : index
    %58 = vector.load %arg1[%c5_46, %c0_47, %c0_48] : memref<8x2x64xf32, #tpu.memory_space<vmem>>, vector<1x2x64xf32>
    %59 = vector.shape_cast %58 : vector<1x2x64xf32> to vector<2x64xf32>
    %c6_49 = arith.constant 6 : index
    %c0_50 = arith.constant 0 : index
    %c0_51 = arith.constant 0 : index
    %60 = vector.load %arg1[%c6_49, %c0_50, %c0_51] : memref<8x2x64xf32, #tpu.memory_space<vmem>>, vector<1x2x64xf32>
    %61 = vector.shape_cast %60 : vector<1x2x64xf32> to vector<2x64xf32>
    %c7_52 = arith.constant 7 : index
    %c0_53 = arith.constant 0 : index
    %c0_54 = arith.constant 0 : index
    %62 = vector.load %arg1[%c7_52, %c0_53, %c0_54] : memref<8x2x64xf32, #tpu.memory_space<vmem>>, vector<1x2x64xf32>
    %63 = vector.shape_cast %62 : vector<1x2x64xf32> to vector<2x64xf32>
    %cst_55 = arith.constant 0.000000e+00 : f32
    %64 = vector.broadcast %cst_55 : f32 to vector<2x64xf32>
    %cst_56 = arith.constant dense<0.000000e+00> : vector<2x192xf32>
    %65 = tpu.matmul %64, %4, %cst_56 {dimension_numbers = #tpu.dot_dimension_numbers<[1], [0], [0], [1], [0, 0, 1, 1], [], []>} : vector<2x64xf32>, vector<64x192xf32>, vector<2x192xf32> -> vector<2x192xf32>
    %66 = vector.broadcast %5 : vector<1x192xf32> to vector<2x192xf32>
    %67 = arith.addf %65, %66 : vector<2x192xf32>
    %68 = vector.extract_strided_slice %12 {offsets = [0, 0], sizes = [2, 128], strides = [1, 1]} : vector<2x192xf32> to vector<2x128xf32>
    %69 = vector.extract_strided_slice %67 {offsets = [0, 0], sizes = [2, 128], strides = [1, 1]} : vector<2x192xf32> to vector<2x128xf32>
    %70 = arith.addf %68, %69 : vector<2x128xf32>
    %71 = arith.negf %70 : vector<2x128xf32>
    %72 = math.exp %71 : vector<2x128xf32>
    %cst_57 = arith.constant 1.000000e+00 : f32
    %73 = vector.broadcast %cst_57 : f32 to vector<2x128xf32>
    %74 = arith.addf %73, %72 : vector<2x128xf32>
    %75 = arith.divf %73, %74 : vector<2x128xf32>
    %76 = vector.extract_strided_slice %75 {offsets = [0, 0], sizes = [2, 64], strides = [1, 1]} : vector<2x128xf32> to vector<2x64xf32>
    %77 = vector.extract_strided_slice %75 {offsets = [0, 64], sizes = [2, 64], strides = [1, 1]} : vector<2x128xf32> to vector<2x64xf32>
    %78 = vector.extract_strided_slice %12 {offsets = [0, 128], sizes = [2, 64], strides = [1, 1]} : vector<2x192xf32> to vector<2x64xf32>
    %79 = vector.extract_strided_slice %67 {offsets = [0, 128], sizes = [2, 64], strides = [1, 1]} : vector<2x192xf32> to vector<2x64xf32>
    %80 = arith.mulf %76, %79 : vector<2x64xf32>
    %81 = arith.addf %78, %80 : vector<2x64xf32>
    %82 = math.tanh %81 : vector<2x64xf32>
    %cst_58 = arith.constant 1.000000e+00 : f32
    %83 = vector.broadcast %cst_58 : f32 to vector<2x64xf32>
    %84 = arith.subf %83, %77 : vector<2x64xf32>
    %85 = arith.mulf %84, %82 : vector<2x64xf32>
    %86 = arith.mulf %77, %64 : vector<2x64xf32>
    %87 = arith.addf %85, %86 : vector<2x64xf32>
    %88 = arith.subf %87, %64 : vector<2x64xf32>
    %89 = arith.mulf %49, %88 : vector<2x64xf32>
    %90 = arith.addf %64, %89 : vector<2x64xf32>
    %cst_59 = arith.constant dense<0.000000e+00> : vector<2x192xf32>
    %91 = tpu.matmul %90, %4, %cst_59 {dimension_numbers = #tpu.dot_dimension_numbers<[1], [0], [0], [1], [0, 0, 1, 1], [], []>} : vector<2x64xf32>, vector<64x192xf32>, vector<2x192xf32> -> vector<2x192xf32>
    %92 = vector.broadcast %5 : vector<1x192xf32> to vector<2x192xf32>
    %93 = arith.addf %91, %92 : vector<2x192xf32>
    %94 = vector.extract_strided_slice %17 {offsets = [0, 0], sizes = [2, 128], strides = [1, 1]} : vector<2x192xf32> to vector<2x128xf32>
    %95 = vector.extract_strided_slice %93 {offsets = [0, 0], sizes = [2, 128], strides = [1, 1]} : vector<2x192xf32> to vector<2x128xf32>
    %96 = arith.addf %94, %95 : vector<2x128xf32>
    %97 = arith.negf %96 : vector<2x128xf32>
    %98 = math.exp %97 : vector<2x128xf32>
    %cst_60 = arith.constant 1.000000e+00 : f32
    %99 = vector.broadcast %cst_60 : f32 to vector<2x128xf32>
    %100 = arith.addf %99, %98 : vector<2x128xf32>
    %101 = arith.divf %99, %100 : vector<2x128xf32>
    %102 = vector.extract_strided_slice %101 {offsets = [0, 0], sizes = [2, 64], strides = [1, 1]} : vector<2x128xf32> to vector<2x64xf32>
    %103 = vector.extract_strided_slice %101 {offsets = [0, 64], sizes = [2, 64], strides = [1, 1]} : vector<2x128xf32> to vector<2x64xf32>
    %104 = vector.extract_strided_slice %17 {offsets = [0, 128], sizes = [2, 64], strides = [1, 1]} : vector<2x192xf32> to vector<2x64xf32>
    %105 = vector.extract_strided_slice %93 {offsets = [0, 128], sizes = [2, 64], strides = [1, 1]} : vector<2x192xf32> to vector<2x64xf32>
    %106 = arith.mulf %102, %105 : vector<2x64xf32>
    %107 = arith.addf %104, %106 : vector<2x64xf32>
    %108 = math.tanh %107 : vector<2x64xf32>
    %cst_61 = arith.constant 1.000000e+00 : f32
    %109 = vector.broadcast %cst_61 : f32 to vector<2x64xf32>
    %110 = arith.subf %109, %103 : vector<2x64xf32>
    %111 = arith.mulf %110, %108 : vector<2x64xf32>
    %112 = arith.mulf %103, %90 : vector<2x64xf32>
    %113 = arith.addf %111, %112 : vector<2x64xf32>
    %114 = arith.subf %113, %90 : vector<2x64xf32>
    %115 = arith.mulf %51, %114 : vector<2x64xf32>
    %116 = arith.addf %90, %115 : vector<2x64xf32>
    %cst_62 = arith.constant dense<0.000000e+00> : vector<2x192xf32>
    %117 = tpu.matmul %116, %4, %cst_62 {dimension_numbers = #tpu.dot_dimension_numbers<[1], [0], [0], [1], [0, 0, 1, 1], [], []>} : vector<2x64xf32>, vector<64x192xf32>, vector<2x192xf32> -> vector<2x192xf32>
    %118 = vector.broadcast %5 : vector<1x192xf32> to vector<2x192xf32>
    %119 = arith.addf %117, %118 : vector<2x192xf32>
    %120 = vector.extract_strided_slice %22 {offsets = [0, 0], sizes = [2, 128], strides = [1, 1]} : vector<2x192xf32> to vector<2x128xf32>
    %121 = vector.extract_strided_slice %119 {offsets = [0, 0], sizes = [2, 128], strides = [1, 1]} : vector<2x192xf32> to vector<2x128xf32>
    %122 = arith.addf %120, %121 : vector<2x128xf32>
    %123 = arith.negf %122 : vector<2x128xf32>
    %124 = math.exp %123 : vector<2x128xf32>
    %cst_63 = arith.constant 1.000000e+00 : f32
    %125 = vector.broadcast %cst_63 : f32 to vector<2x128xf32>
    %126 = arith.addf %125, %124 : vector<2x128xf32>
    %127 = arith.divf %125, %126 : vector<2x128xf32>
    %128 = vector.extract_strided_slice %127 {offsets = [0, 0], sizes = [2, 64], strides = [1, 1]} : vector<2x128xf32> to vector<2x64xf32>
    %129 = vector.extract_strided_slice %127 {offsets = [0, 64], sizes = [2, 64], strides = [1, 1]} : vector<2x128xf32> to vector<2x64xf32>
    %130 = vector.extract_strided_slice %22 {offsets = [0, 128], sizes = [2, 64], strides = [1, 1]} : vector<2x192xf32> to vector<2x64xf32>
    %131 = vector.extract_strided_slice %119 {offsets = [0, 128], sizes = [2, 64], strides = [1, 1]} : vector<2x192xf32> to vector<2x64xf32>
    %132 = arith.mulf %128, %131 : vector<2x64xf32>
    %133 = arith.addf %130, %132 : vector<2x64xf32>
    %134 = math.tanh %133 : vector<2x64xf32>
    %cst_64 = arith.constant 1.000000e+00 : f32
    %135 = vector.broadcast %cst_64 : f32 to vector<2x64xf32>
    %136 = arith.subf %135, %129 : vector<2x64xf32>
    %137 = arith.mulf %136, %134 : vector<2x64xf32>
    %138 = arith.mulf %129, %116 : vector<2x64xf32>
    %139 = arith.addf %137, %138 : vector<2x64xf32>
    %140 = arith.subf %139, %116 : vector<2x64xf32>
    %141 = arith.mulf %53, %140 : vector<2x64xf32>
    %142 = arith.addf %116, %141 : vector<2x64xf32>
    %cst_65 = arith.constant dense<0.000000e+00> : vector<2x192xf32>
    %143 = tpu.matmul %142, %4, %cst_65 {dimension_numbers = #tpu.dot_dimension_numbers<[1], [0], [0], [1], [0, 0, 1, 1], [], []>} : vector<2x64xf32>, vector<64x192xf32>, vector<2x192xf32> -> vector<2x192xf32>
    %144 = vector.broadcast %5 : vector<1x192xf32> to vector<2x192xf32>
    %145 = arith.addf %143, %144 : vector<2x192xf32>
    %146 = vector.extract_strided_slice %27 {offsets = [0, 0], sizes = [2, 128], strides = [1, 1]} : vector<2x192xf32> to vector<2x128xf32>
    %147 = vector.extract_strided_slice %145 {offsets = [0, 0], sizes = [2, 128], strides = [1, 1]} : vector<2x192xf32> to vector<2x128xf32>
    %148 = arith.addf %146, %147 : vector<2x128xf32>
    %149 = arith.negf %148 : vector<2x128xf32>
    %150 = math.exp %149 : vector<2x128xf32>
    %cst_66 = arith.constant 1.000000e+00 : f32
    %151 = vector.broadcast %cst_66 : f32 to vector<2x128xf32>
    %152 = arith.addf %151, %150 : vector<2x128xf32>
    %153 = arith.divf %151, %152 : vector<2x128xf32>
    %154 = vector.extract_strided_slice %153 {offsets = [0, 0], sizes = [2, 64], strides = [1, 1]} : vector<2x128xf32> to vector<2x64xf32>
    %155 = vector.extract_strided_slice %153 {offsets = [0, 64], sizes = [2, 64], strides = [1, 1]} : vector<2x128xf32> to vector<2x64xf32>
    %156 = vector.extract_strided_slice %27 {offsets = [0, 128], sizes = [2, 64], strides = [1, 1]} : vector<2x192xf32> to vector<2x64xf32>
    %157 = vector.extract_strided_slice %145 {offsets = [0, 128], sizes = [2, 64], strides = [1, 1]} : vector<2x192xf32> to vector<2x64xf32>
    %158 = arith.mulf %154, %157 : vector<2x64xf32>
    %159 = arith.addf %156, %158 : vector<2x64xf32>
    %160 = math.tanh %159 : vector<2x64xf32>
    %cst_67 = arith.constant 1.000000e+00 : f32
    %161 = vector.broadcast %cst_67 : f32 to vector<2x64xf32>
    %162 = arith.subf %161, %155 : vector<2x64xf32>
    %163 = arith.mulf %162, %160 : vector<2x64xf32>
    %164 = arith.mulf %155, %142 : vector<2x64xf32>
    %165 = arith.addf %163, %164 : vector<2x64xf32>
    %166 = arith.subf %165, %142 : vector<2x64xf32>
    %167 = arith.mulf %55, %166 : vector<2x64xf32>
    %168 = arith.addf %142, %167 : vector<2x64xf32>
    %cst_68 = arith.constant dense<0.000000e+00> : vector<2x192xf32>
    %169 = tpu.matmul %168, %4, %cst_68 {dimension_numbers = #tpu.dot_dimension_numbers<[1], [0], [0], [1], [0, 0, 1, 1], [], []>} : vector<2x64xf32>, vector<64x192xf32>, vector<2x192xf32> -> vector<2x192xf32>
    %170 = vector.broadcast %5 : vector<1x192xf32> to vector<2x192xf32>
    %171 = arith.addf %169, %170 : vector<2x192xf32>
    %172 = vector.extract_strided_slice %32 {offsets = [0, 0], sizes = [2, 128], strides = [1, 1]} : vector<2x192xf32> to vector<2x128xf32>
    %173 = vector.extract_strided_slice %171 {offsets = [0, 0], sizes = [2, 128], strides = [1, 1]} : vector<2x192xf32> to vector<2x128xf32>
    %174 = arith.addf %172, %173 : vector<2x128xf32>
    %175 = arith.negf %174 : vector<2x128xf32>
    %176 = math.exp %175 : vector<2x128xf32>
    %cst_69 = arith.constant 1.000000e+00 : f32
    %177 = vector.broadcast %cst_69 : f32 to vector<2x128xf32>
    %178 = arith.addf %177, %176 : vector<2x128xf32>
    %179 = arith.divf %177, %178 : vector<2x128xf32>
    %180 = vector.extract_strided_slice %179 {offsets = [0, 0], sizes = [2, 64], strides = [1, 1]} : vector<2x128xf32> to vector<2x64xf32>
    %181 = vector.extract_strided_slice %179 {offsets = [0, 64], sizes = [2, 64], strides = [1, 1]} : vector<2x128xf32> to vector<2x64xf32>
    %182 = vector.extract_strided_slice %32 {offsets = [0, 128], sizes = [2, 64], strides = [1, 1]} : vector<2x192xf32> to vector<2x64xf32>
    %183 = vector.extract_strided_slice %171 {offsets = [0, 128], sizes = [2, 64], strides = [1, 1]} : vector<2x192xf32> to vector<2x64xf32>
    %184 = arith.mulf %180, %183 : vector<2x64xf32>
    %185 = arith.addf %182, %184 : vector<2x64xf32>
    %186 = math.tanh %185 : vector<2x64xf32>
    %cst_70 = arith.constant 1.000000e+00 : f32
    %187 = vector.broadcast %cst_70 : f32 to vector<2x64xf32>
    %188 = arith.subf %187, %181 : vector<2x64xf32>
    %189 = arith.mulf %188, %186 : vector<2x64xf32>
    %190 = arith.mulf %181, %168 : vector<2x64xf32>
    %191 = arith.addf %189, %190 : vector<2x64xf32>
    %192 = arith.subf %191, %168 : vector<2x64xf32>
    %193 = arith.mulf %57, %192 : vector<2x64xf32>
    %194 = arith.addf %168, %193 : vector<2x64xf32>
    %cst_71 = arith.constant dense<0.000000e+00> : vector<2x192xf32>
    %195 = tpu.matmul %194, %4, %cst_71 {dimension_numbers = #tpu.dot_dimension_numbers<[1], [0], [0], [1], [0, 0, 1, 1], [], []>} : vector<2x64xf32>, vector<64x192xf32>, vector<2x192xf32> -> vector<2x192xf32>
    %196 = vector.broadcast %5 : vector<1x192xf32> to vector<2x192xf32>
    %197 = arith.addf %195, %196 : vector<2x192xf32>
    %198 = vector.extract_strided_slice %37 {offsets = [0, 0], sizes = [2, 128], strides = [1, 1]} : vector<2x192xf32> to vector<2x128xf32>
    %199 = vector.extract_strided_slice %197 {offsets = [0, 0], sizes = [2, 128], strides = [1, 1]} : vector<2x192xf32> to vector<2x128xf32>
    %200 = arith.addf %198, %199 : vector<2x128xf32>
    %201 = arith.negf %200 : vector<2x128xf32>
    %202 = math.exp %201 : vector<2x128xf32>
    %cst_72 = arith.constant 1.000000e+00 : f32
    %203 = vector.broadcast %cst_72 : f32 to vector<2x128xf32>
    %204 = arith.addf %203, %202 : vector<2x128xf32>
    %205 = arith.divf %203, %204 : vector<2x128xf32>
    %206 = vector.extract_strided_slice %205 {offsets = [0, 0], sizes = [2, 64], strides = [1, 1]} : vector<2x128xf32> to vector<2x64xf32>
    %207 = vector.extract_strided_slice %205 {offsets = [0, 64], sizes = [2, 64], strides = [1, 1]} : vector<2x128xf32> to vector<2x64xf32>
    %208 = vector.extract_strided_slice %37 {offsets = [0, 128], sizes = [2, 64], strides = [1, 1]} : vector<2x192xf32> to vector<2x64xf32>
    %209 = vector.extract_strided_slice %197 {offsets = [0, 128], sizes = [2, 64], strides = [1, 1]} : vector<2x192xf32> to vector<2x64xf32>
    %210 = arith.mulf %206, %209 : vector<2x64xf32>
    %211 = arith.addf %208, %210 : vector<2x64xf32>
    %212 = math.tanh %211 : vector<2x64xf32>
    %cst_73 = arith.constant 1.000000e+00 : f32
    %213 = vector.broadcast %cst_73 : f32 to vector<2x64xf32>
    %214 = arith.subf %213, %207 : vector<2x64xf32>
    %215 = arith.mulf %214, %212 : vector<2x64xf32>
    %216 = arith.mulf %207, %194 : vector<2x64xf32>
    %217 = arith.addf %215, %216 : vector<2x64xf32>
    %218 = arith.subf %217, %194 : vector<2x64xf32>
    %219 = arith.mulf %59, %218 : vector<2x64xf32>
    %220 = arith.addf %194, %219 : vector<2x64xf32>
    %cst_74 = arith.constant dense<0.000000e+00> : vector<2x192xf32>
    %221 = tpu.matmul %220, %4, %cst_74 {dimension_numbers = #tpu.dot_dimension_numbers<[1], [0], [0], [1], [0, 0, 1, 1], [], []>} : vector<2x64xf32>, vector<64x192xf32>, vector<2x192xf32> -> vector<2x192xf32>
    %222 = vector.broadcast %5 : vector<1x192xf32> to vector<2x192xf32>
    %223 = arith.addf %221, %222 : vector<2x192xf32>
    %224 = vector.extract_strided_slice %42 {offsets = [0, 0], sizes = [2, 128], strides = [1, 1]} : vector<2x192xf32> to vector<2x128xf32>
    %225 = vector.extract_strided_slice %223 {offsets = [0, 0], sizes = [2, 128], strides = [1, 1]} : vector<2x192xf32> to vector<2x128xf32>
    %226 = arith.addf %224, %225 : vector<2x128xf32>
    %227 = arith.negf %226 : vector<2x128xf32>
    %228 = math.exp %227 : vector<2x128xf32>
    %cst_75 = arith.constant 1.000000e+00 : f32
    %229 = vector.broadcast %cst_75 : f32 to vector<2x128xf32>
    %230 = arith.addf %229, %228 : vector<2x128xf32>
    %231 = arith.divf %229, %230 : vector<2x128xf32>
    %232 = vector.extract_strided_slice %231 {offsets = [0, 0], sizes = [2, 64], strides = [1, 1]} : vector<2x128xf32> to vector<2x64xf32>
    %233 = vector.extract_strided_slice %231 {offsets = [0, 64], sizes = [2, 64], strides = [1, 1]} : vector<2x128xf32> to vector<2x64xf32>
    %234 = vector.extract_strided_slice %42 {offsets = [0, 128], sizes = [2, 64], strides = [1, 1]} : vector<2x192xf32> to vector<2x64xf32>
    %235 = vector.extract_strided_slice %223 {offsets = [0, 128], sizes = [2, 64], strides = [1, 1]} : vector<2x192xf32> to vector<2x64xf32>
    %236 = arith.mulf %232, %235 : vector<2x64xf32>
    %237 = arith.addf %234, %236 : vector<2x64xf32>
    %238 = math.tanh %237 : vector<2x64xf32>
    %cst_76 = arith.constant 1.000000e+00 : f32
    %239 = vector.broadcast %cst_76 : f32 to vector<2x64xf32>
    %240 = arith.subf %239, %233 : vector<2x64xf32>
    %241 = arith.mulf %240, %238 : vector<2x64xf32>
    %242 = arith.mulf %233, %220 : vector<2x64xf32>
    %243 = arith.addf %241, %242 : vector<2x64xf32>
    %244 = arith.subf %243, %220 : vector<2x64xf32>
    %245 = arith.mulf %61, %244 : vector<2x64xf32>
    %246 = arith.addf %220, %245 : vector<2x64xf32>
    %cst_77 = arith.constant dense<0.000000e+00> : vector<2x192xf32>
    %247 = tpu.matmul %246, %4, %cst_77 {dimension_numbers = #tpu.dot_dimension_numbers<[1], [0], [0], [1], [0, 0, 1, 1], [], []>} : vector<2x64xf32>, vector<64x192xf32>, vector<2x192xf32> -> vector<2x192xf32>
    %248 = vector.broadcast %5 : vector<1x192xf32> to vector<2x192xf32>
    %249 = arith.addf %247, %248 : vector<2x192xf32>
    %250 = vector.extract_strided_slice %47 {offsets = [0, 0], sizes = [2, 128], strides = [1, 1]} : vector<2x192xf32> to vector<2x128xf32>
    %251 = vector.extract_strided_slice %249 {offsets = [0, 0], sizes = [2, 128], strides = [1, 1]} : vector<2x192xf32> to vector<2x128xf32>
    %252 = arith.addf %250, %251 : vector<2x128xf32>
    %253 = arith.negf %252 : vector<2x128xf32>
    %254 = math.exp %253 : vector<2x128xf32>
    %cst_78 = arith.constant 1.000000e+00 : f32
    %255 = vector.broadcast %cst_78 : f32 to vector<2x128xf32>
    %256 = arith.addf %255, %254 : vector<2x128xf32>
    %257 = arith.divf %255, %256 : vector<2x128xf32>
    %258 = vector.extract_strided_slice %257 {offsets = [0, 0], sizes = [2, 64], strides = [1, 1]} : vector<2x128xf32> to vector<2x64xf32>
    %259 = vector.extract_strided_slice %257 {offsets = [0, 64], sizes = [2, 64], strides = [1, 1]} : vector<2x128xf32> to vector<2x64xf32>
    %260 = vector.extract_strided_slice %47 {offsets = [0, 128], sizes = [2, 64], strides = [1, 1]} : vector<2x192xf32> to vector<2x64xf32>
    %261 = vector.extract_strided_slice %249 {offsets = [0, 128], sizes = [2, 64], strides = [1, 1]} : vector<2x192xf32> to vector<2x64xf32>
    %262 = arith.mulf %258, %261 : vector<2x64xf32>
    %263 = arith.addf %260, %262 : vector<2x64xf32>
    %264 = math.tanh %263 : vector<2x64xf32>
    %cst_79 = arith.constant 1.000000e+00 : f32
    %265 = vector.broadcast %cst_79 : f32 to vector<2x64xf32>
    %266 = arith.subf %265, %259 : vector<2x64xf32>
    %267 = arith.mulf %266, %264 : vector<2x64xf32>
    %268 = arith.mulf %259, %246 : vector<2x64xf32>
    %269 = arith.addf %267, %268 : vector<2x64xf32>
    %270 = arith.subf %269, %246 : vector<2x64xf32>
    %271 = arith.mulf %63, %270 : vector<2x64xf32>
    %272 = arith.addf %246, %271 : vector<2x64xf32>
    %273 = vector.extract_strided_slice %6 {offsets = [0, 0], sizes = [64, 16], strides = [1, 1]} : vector<71x16xf32> to vector<64x16xf32>
    %cst_80 = arith.constant dense<0.000000e+00> : vector<2x16xf32>
    %274 = tpu.matmul %272, %273, %cst_80 {dimension_numbers = #tpu.dot_dimension_numbers<[1], [0], [0], [1], [0, 0, 1, 1], [], []>} : vector<2x64xf32>, vector<64x16xf32>, vector<2x16xf32> -> vector<2x16xf32>
    %275 = vector.extract_strided_slice %6 {offsets = [70, 0], sizes = [1, 16], strides = [1, 1]} : vector<71x16xf32> to vector<1x16xf32>
    %276 = vector.broadcast %275 : vector<1x16xf32> to vector<2x16xf32>
    %277 = arith.addf %274, %276 : vector<2x16xf32>
    %c0_81 = arith.constant 0 : index
    %c0_82 = arith.constant 0 : index
    %278 = vector.load %arg2[%c0_81, %c0_82] : memref<2x6xf32, #tpu.memory_space<vmem>>, vector<2x6xf32>
    %279 = math.tanh %278 : vector<2x6xf32>
    %280 = vector.extract_strided_slice %6 {offsets = [64, 0], sizes = [6, 16], strides = [1, 1]} : vector<71x16xf32> to vector<6x16xf32>
    %cst_83 = arith.constant dense<0.000000e+00> : vector<2x16xf32>
    %281 = tpu.matmul %279, %280, %cst_83 {dimension_numbers = #tpu.dot_dimension_numbers<[1], [0], [0], [1], [0, 0, 1, 1], [], []>} : vector<2x6xf32>, vector<6x16xf32>, vector<2x16xf32> -> vector<2x16xf32>
    %282 = arith.addf %277, %281 : vector<2x16xf32>
    %cst_84 = arith.constant 0.000000e+00 : f32
    %283 = vector.broadcast %cst_84 : f32 to vector<2x16xf32>
    %284 = arith.maximumf %282, %283 : vector<2x16xf32>
    %285 = math.tanh %284 : vector<2x16xf32>
    %286 = vector.extract_strided_slice %7 {offsets = [0, 0], sizes = [16, 1], strides = [1, 1]} : vector<17x1xf32> to vector<16x1xf32>
    %cst_85 = arith.constant dense<0.000000e+00> : vector<2x1xf32>
    %287 = tpu.matmul %285, %286, %cst_85 {dimension_numbers = #tpu.dot_dimension_numbers<[1], [0], [0], [1], [0, 0, 1, 1], [], []>} : vector<2x16xf32>, vector<16x1xf32>, vector<2x1xf32> -> vector<2x1xf32>
    %288 = vector.extract_strided_slice %7 {offsets = [16, 0], sizes = [1, 1], strides = [1, 1]} : vector<17x1xf32> to vector<1x1xf32>
    %289 = vector.broadcast %288 : vector<1x1xf32> to vector<2x1xf32>
    %290 = arith.addf %287, %289 : vector<2x1xf32>
    %c0_86 = arith.constant 0 : index
    %c0_87 = arith.constant 0 : index
    %291 = vector.load %arg7[%c0_86, %c0_87] : memref<2x1xf32, #tpu.memory_space<vmem>>, vector<2x1xf32>
    tpu.vector_store %arg7[%c0_86, %c0_87], %290 {strides = array<i32>} : memref<2x1xf32, #tpu.memory_space<vmem>>, vector<2x1xf32>,
    return
  }
}

</mosaic_0001>

<llo_original>
// kernel: gru_regr_forward.1
$region0: #{gru_regr_forward.1}
  #allocation0 [shape = 'u32[]', space=smem, size = 0x4, offset = 0x4, fixed_abs, tag = 'smem constant byte address 0x4 - core index']
  #allocation1 [shape = 'u32[144,128]{1,0:T(1,128)}', space=vmem, size = 0x12000, scoped, tag = 'internal scratch']
  %s0 = inlined_call_operand.vmem [shape: f32[8,2,8], index: 0, kind: input, shape index: {}]
  %s1 = inlined_call_operand.vmem [shape: f32[8,2,64], index: 1, kind: input, shape index: {}]
  %s2 = inlined_call_operand.vmem [shape: f32[2,6], index: 2, kind: input, shape index: {}]
  %s3 = inlined_call_operand.vmem [shape: f32[9,192], index: 3, kind: input, shape index: {}]
  %s4 = inlined_call_operand.vmem [shape: f32[65,192], index: 4, kind: input, shape index: {}]
  %s5 = inlined_call_operand.vmem [shape: f32[71,16], index: 5, kind: input, shape index: {}]
  %s6 = inlined_call_operand.vmem [shape: f32[17,1], index: 6, kind: input, shape index: {}]
  %s7 = inlined_call_operand.vmem [shape: f32[2,1], index: 7, kind: output, shape index: {}]
  %s8 = sld [smem:[#allocation0]]
  $region38: #{gru_regr_forward.1} parent=0
    _
  %s10 = ssub.s32 1, %s8
  %s11 = scalar_select 0, %s10, %s8
  // Predicated region
  $region2: #{gru_regr_forward.1} parent=0 // pred_check
    _
  $region3: #{gru_regr_forward.1} parent=0 // pred_check_branch
    %13 = sbr.rel (0) target = $region5
  $region4: #{gru_regr_forward.1} parent=0 // pred_region
    _
  $region5: #{gru_regr_forward.1} parent=0 // pred_fallthru
    _
  // Predicated region
  $region6: #{gru_regr_forward.1} parent=0 // pred_check
    _
  $region7: #{gru_regr_forward.1} parent=0 // pred_check_branch
    %15 = sbr.rel (0) target = $region9
  $region8: #{gru_regr_forward.1} parent=0 // pred_region
    _
  $region9: #{gru_regr_forward.1} parent=0 // pred_fallthru
    _
  // Predicated region
  $region10: #{gru_regr_forward.1} parent=0 // pred_check
    _
  $region11: #{gru_regr_forward.1} parent=0 // pred_check_branch
    %17 = sbr.rel (0) target = $region13
  $region12: #{gru_regr_forward.1} parent=0 // pred_region
    _
  $region13: #{gru_regr_forward.1} parent=0 // pred_fallthru
    _
  // Predicated region
  $region14: #{gru_regr_forward.1} parent=0 // pred_check
    _
  $region15: #{gru_regr_forward.1} parent=0 // pred_check_branch
    %19 = sbr.rel (0) target = $region17
  $region16: #{gru_regr_forward.1} parent=0 // pred_region
    _
  $region17: #{gru_regr_forward.1} parent=0 // pred_fallthru
    _
  // Predicated region
  $region18: #{gru_regr_forward.1} parent=0 // pred_check
    _
  $region19: #{gru_regr_forward.1} parent=0 // pred_check_branch
    %21 = sbr.rel (0) target = $region21
  $region20: #{gru_regr_forward.1} parent=0 // pred_region
    _
  $region21: #{gru_regr_forward.1} parent=0 // pred_fallthru
    _
  // Predicated region
  $region22: #{gru_regr_forward.1} parent=0 // pred_check
    _
  $region23: #{gru_regr_forward.1} parent=0 // pred_check_branch
    %23 = sbr.rel (0) target = $region25
  $region24: #{gru_regr_forward.1} parent=0 // pred_region
    _
  $region25: #{gru_regr_forward.1} parent=0 // pred_fallthru
    _
  // Predicated region
  $region26: #{gru_regr_forward.1} parent=0 // pred_check
    _
  $region27: #{gru_regr_forward.1} parent=0 // pred_check_branch
    %25 = sbr.rel (0) target = $region29
  $region28: #{gru_regr_forward.1} parent=0 // pred_region
    _
  $region29: #{gru_regr_forward.1} parent=0 // pred_fallthru
    _
  %v26 = vld [vmem:[%s3] sm:$0xff]
  %v27 = vld [vmem:[%s3 + $0x8] sm:$0xff]
  %v28 = vld [vmem:[%s3 + $0x10] sm:$0x1]
  %v29 = vld [vmem:[%s3 + $0x18] sm:$0x1]
  %v30 = vld [vmem:[%s4] sm:$0xff]
  %v31 = vld [vmem:[%s4 + $0x8] sm:$0xff]
  %v32 = vld [vmem:[%s4 + $0x10] sm:$0xff]
  %v33 = vld [vmem:[%s4 + $0x18] sm:$0xff]
  %v34 = vld [vmem:[%s4 + $0x20] sm:$0xff]
  %v35 = vld [vmem:[%s4 + $0x28] sm:$0xff]
  %v36 = vld [vmem:[%s4 + $0x30] sm:$0xff]
  %v37 = vld [vmem:[%s4 + $0x38] sm:$0xff]
  %v38 = vld [vmem:[%s4 + $0x40] sm:$0xff]
  %v39 = vld [vmem:[%s4 + $0x48] sm:$0xff]
  %v40 = vld [vmem:[%s4 + $0x50] sm:$0xff]
  %v41 = vld [vmem:[%s4 + $0x58] sm:$0xff]
  %v42 = vld [vmem:[%s4 + $0x60] sm:$0xff]
  %v43 = vld [vmem:[%s4 + $0x68] sm:$0xff]
  %v44 = vld [vmem:[%s4 + $0x70] sm:$0xff]
  %v45 = vld [vmem:[%s4 + $0x78] sm:$0xff]
  %v46 = vld [vmem:[%s4 + $0x80] sm:$0x1]
  %v47 = vld [vmem:[%s4 + $0x88] sm:$0x1]
  %v48 = vld [vmem:[%s5] sm:$0xff]
  %v49 = vld [vmem:[%s5 + $0x8] sm:$0xff]
  %v50 = vld [vmem:[%s5 + $0x10] sm:$0xff]
  %v51 = vld [vmem:[%s5 + $0x18] sm:$0xff]
  %v52 = vld [vmem:[%s5 + $0x20] sm:$0xff]
  %v53 = vld [vmem:[%s5 + $0x28] sm:$0xff]
  %v54 = vld [vmem:[%s5 + $0x30] sm:$0xff]
  %v55 = vld [vmem:[%s5 + $0x38] sm:$0xff]
  %v56 = vld [vmem:[%s5 + $0x40] sm:$0x7f]
  %v57 = vld [vmem:[%s6] sm:$0xff]
  %v58 = vld [vmem:[%s6 + $0x8] sm:$0xff]
  %v59 = vld [vmem:[%s6 + $0x10] sm:$0x1]
  %v60 = vld [vmem:[%s0] sm:$0x3]
  %v61 = vlaneseq
  %v62 = vshrl.u32 %v61, 7
  %v63 = vsub.s32 0, %v62
  %v64 = vrot.slane %v28, %v63
  %v65 = vlaneseq
  %v66 = vshrl.u32 %v65, 7
  %v67 = vsub.s32 0, %v66
  %v68 = vrot.slane %v29, %v67
  %vm69 = vcmask 64512
  %v71 = vsel %vm69, %v60, 0
  %73 = vmatprep.subr.mxu0 0.0
  %74 = vmatpush1.msra.mxu0 0.0
  %75 = vmatprep.subr.mxu0 0.0
  %76 = vmatpush1.msra.mxu0 0.0
  %77 = vmatprep.subr.mxu0 0.0
  %78 = vmatpush1.msra.mxu0 0.0
  %79 = vmatprep.subr.mxu0 0.0
  %80 = vmatpush1.msra.mxu0 0.0
  %81 = vmatprep.subr.mxu0 0.0
  %82 = vmatpush1.msra.mxu0 0.0
  %83 = vmatprep.subr.mxu0 0.0
  %84 = vmatpush1.msra.mxu0 0.0
  %85 = vmatprep.subr.mxu0 0.0
  %86 = vmatpush1.msra.mxu0 0.0
  %87 = vmatprep.subr.mxu0 0.0
  %88 = vmatpush1.msra.mxu0 0.0
  %89 = vmatprep.subr.mxu0 0.0
  %90 = vmatpush1.msra.mxu0 0.0
  %91 = vmatprep.subr.mxu0 0.0
  %92 = vmatpush1.msra.mxu0 0.0
  %93 = vmatprep.subr.mxu0 0.0
  %94 = vmatpush1.msra.mxu0 0.0
  %95 = vmatprep.subr.mxu0 0.0
  %96 = vmatpush1.msra.mxu0 0.0
  %97 = vmatprep.subr.mxu0 0.0
  %98 = vmatpush1.msra.mxu0 0.0
  %99 = vmatprep.subr.mxu0 0.0
  %100 = vmatpush1.msra.mxu0 0.0
  %101 = vmatprep.subr.mxu0 0.0
  %102 = vmatpush1.msra.mxu0 0.0
  %103 = vmatprep.subr.mxu0 %v27
  %104 = vmatpush1.msra.mxu0 %v26
  %105 = vmatprep.subr.mxu0 0.0
  %106 = vmatpush2.msra.mxu0 0.0
  %107 = vmatprep.subr.mxu0 0.0
  %108 = vmatpush2.msra.mxu0 0.0
  %109 = vmatprep.subr.mxu0 0.0
  %110 = vmatpush2.msra.mxu0 0.0
  %111 = vmatprep.subr.mxu0 0.0
  %112 = vmatpush2.msra.mxu0 0.0
  %113 = vmatprep.subr.mxu0 0.0
  %114 = vmatpush2.msra.mxu0 0.0
  %115 = vmatprep.subr.mxu0 0.0
  %116 = vmatpush2.msra.mxu0 0.0
  %117 = vmatprep.subr.mxu0 0.0
  %118 = vmatpush2.msra.mxu0 0.0
  %119 = vmatprep.subr.mxu0 0.0
  %120 = vmatpush2.msra.mxu0 0.0
  %121 = vmatprep.subr.mxu0 0.0
  %122 = vmatpush2.msra.mxu0 0.0
  %123 = vmatprep.subr.mxu0 0.0
  %124 = vmatpush2.msra.mxu0 0.0
  %125 = vmatprep.subr.mxu0 0.0
  %126 = vmatpush2.msra.mxu0 0.0
  %127 = vmatprep.subr.mxu0 0.0
  %128 = vmatpush2.msra.mxu0 0.0
  %129 = vmatprep.subr.mxu0 0.0
  %130 = vmatpush2.msra.mxu0 0.0
  %131 = vmatprep.subr.mxu0 0.0
  %132 = vmatpush2.msra.mxu0 0.0
  %133 = vmatprep.subr.mxu0 0.0
  %134 = vmatpush2.msra.mxu0 0.0
  %135 = vmatprep.subr.mxu0 0.0
  %136 = vmatpush2.msra.mxu0 0.0
  %137 = vmatprep.mubr.f32.mxu0 0.0
  %138 = vmatmul.mubr.f32.gmra.mxu0 %v71
  %v139 = vpop.f32.mrf.mxu0
  %v140 = vadd.f32 %v64, %v139
  %v141 = vpop.f32.mrf.mxu0
  %v142 = vadd.f32 %v68, %v141
  %143 = vdwg.mxu0
  %s144 = scalar_lea.vmem %s0, 2
  %v145 = vld [vmem:[%s144] sm:$0x3]
  %v147 = vsel %vm69, %v145, 0
  %149 = vmatprep.subr.mxu0 0.0
  %150 = vmatpush1.msra.mxu0 0.0
  %151 = vmatprep.subr.mxu0 0.0
  %152 = vmatpush1.msra.mxu0 0.0
  %153 = vmatprep.subr.mxu0 0.0
  %154 = vmatpush1.msra.mxu0 0.0
  %155 = vmatprep.subr.mxu0 0.0
  %156 = vmatpush1.msra.mxu0 0.0
  %157 = vmatprep.subr.mxu0 0.0
  %158 = vmatpush1.msra.mxu0 0.0
  %159 = vmatprep.subr.mxu0 0.0
  %160 = vmatpush1.msra.mxu0 0.0
  %161 = vmatprep.subr.mxu0 0.0
  %162 = vmatpush1.msra.mxu0 0.0
  %163 = vmatprep.subr.mxu0 0.0
  %164 = vmatpush1.msra.mxu0 0.0
  %165 = vmatprep.subr.mxu0 0.0
  %166 = vmatpush1.msra.mxu0 0.0
  %167 = vmatprep.subr.mxu0 0.0
  %168 = vmatpush1.msra.mxu0 0.0
  %169 = vmatprep.subr.mxu0 0.0
  %170 = vmatpush1.msra.mxu0 0.0
  %171 = vmatprep.subr.mxu0 0.0
  %172 = vmatpush1.msra.mxu0 0.0
  %173 = vmatprep.subr.mxu0 0.0
  %174 = vmatpush1.msra.mxu0 0.0
  %175 = vmatprep.subr.mxu0 0.0
  %176 = vmatpush1.msra.mxu0 0.0
  %177 = vmatprep.subr.mxu0 0.0
  %178 = vmatpush1.msra.mxu0 0.0
  %179 = vmatprep.subr.mxu0 %v27
  %180 = vmatpush1.msra.mxu0 %v26
  %181 = vmatprep.subr.mxu0 0.0
  %182 = vmatpush2.msra.mxu0 0.0
  %183 = vmatprep.subr.mxu0 0.0
  %184 = vmatpush2.msra.mxu0 0.0
  %185 = vmatprep.subr.mxu0 0.0
  %186 = vmatpush2.msra.mxu0 0.0
  %187 = vmatprep.subr.mxu0 0.0
  %188 = vmatpush2.msra.mxu0 0.0
  %189 = vmatprep.subr.mxu0 0.0
  %190 = vmatpush2.msra.mxu0 0.0
  %191 = vmatprep.subr.mxu0 0.0
  %192 = vmatpush2.msra.mxu0 0.0
  %193 = vmatprep.subr.mxu0 0.0
  %194 = vmatpush2.msra.mxu0 0.0
  %195 = vmatprep.subr.mxu0 0.0
  %196 = vmatpush2.msra.mxu0 0.0
  %197 = vmatprep.subr.mxu0 0.0
  %198 = vmatpush2.msra.mxu0 0.0
  %199 = vmatprep.subr.mxu0 0.0
  %200 = vmatpush2.msra.mxu0 0.0
  %201 = vmatprep.subr.mxu0 0.0
  %202 = vmatpush2.msra.mxu0 0.0
  %203 = vmatprep.subr.mxu0 0.0
  %204 = vmatpush2.msra.mxu0 0.0
  %205 = vmatprep.subr.mxu0 0.0
  %206 = vmatpush2.msra.mxu0 0.0
  %207 = vmatprep.subr.mxu0 0.0
  %208 = vmatpush2.msra.mxu0 0.0
  %209 = vmatprep.subr.mxu0 0.0
  %210 = vmatpush2.msra.mxu0 0.0
  %211 = vmatprep.subr.mxu0 0.0
  %212 = vmatpush2.msra.mxu0 0.0
  %213 = vmatprep.mubr.f32.mxu0 0.0
  %214 = vmatmul.mubr.f32.gmra.mxu0 %v147
  %v215 = vpop.f32.mrf.mxu0
  %v216 = vadd.f32 %v64, %v215
  %v217 = vpop.f32.mrf.mxu0
  %v218 = vadd.f32 %v68, %v217
  %219 = vdwg.mxu0
  %s220 = scalar_lea.vmem %s0, 4
  %v221 = vld [vmem:[%s220] sm:$0x3]
  %v223 = vsel %vm69, %v221, 0
  %225 = vmatprep.subr.mxu0 0.0
  %226 = vmatpush1.msra.mxu0 0.0
  %227 = vmatprep.subr.mxu0 0.0
  %228 = vmatpush1.msra.mxu0 0.0
  %229 = vmatprep.subr.mxu0 0.0
  %230 = vmatpush1.msra.mxu0 0.0
  %231 = vmatprep.subr.mxu0 0.0
  %232 = vmatpush1.msra.mxu0 0.0
  %233 = vmatprep.subr.mxu0 0.0
  %234 = vmatpush1.msra.mxu0 0.0
  %235 = vmatprep.subr.mxu0 0.0
  %236 = vmatpush1.msra.mxu0 0.0
  %237 = vmatprep.subr.mxu0 0.0
  %238 = vmatpush1.msra.mxu0 0.0
  %239 = vmatprep.subr.mxu0 0.0
  %240 = vmatpush1.msra.mxu0 0.0
  %241 = vmatprep.subr.mxu0 0.0
  %242 = vmatpush1.msra.mxu0 0.0
  %243 = vmatprep.subr.mxu0 0.0
  %244 = vmatpush1.msra.mxu0 0.0
  %245 = vmatprep.subr.mxu0 0.0
  %246 = vmatpush1.msra.mxu0 0.0
  %247 = vmatprep.subr.mxu0 0.0
  %248 = vmatpush1.msra.mxu0 0.0
  %249 = vmatprep.subr.mxu0 0.0
  %250 = vmatpush1.msra.mxu0 0.0
  %251 = vmatprep.subr.mxu0 0.0
  %252 = vmatpush1.msra.mxu0 0.0
  %253 = vmatprep.subr.mxu0 0.0
  %254 = vmatpush1.msra.mxu0 0.0
  %255 = vmatprep.subr.mxu0 %v27
  %256 = vmatpush1.msra.mxu0 %v26
  %257 = vmatprep.subr.mxu0 0.0
  %258 = vmatpush2.msra.mxu0 0.0
  %259 = vmatprep.subr.mxu0 0.0
  %260 = vmatpush2.msra.mxu0 0.0
  %261 = vmatprep.subr.mxu0 0.0
  %262 = vmatpush2.msra.mxu0 0.0
  %263 = vmatprep.subr.mxu0 0.0
  %264 = vmatpush2.msra.mxu0 0.0
  %265 = vmatprep.subr.mxu0 0.0
  %266 = vmatpush2.msra.mxu0 0.0
  %267 = vmatprep.subr.mxu0 0.0
  %268 = vmatpush2.msra.mxu0 0.0
  %269 = vmatprep.subr.mxu0 0.0
  %270 = vmatpush2.msra.mxu0 0.0
  %271 = vmatprep.subr.mxu0 0.0
  %272 = vmatpush2.msra.mxu0 0.0
  %273 = vmatprep.subr.mxu0 0.0
  %274 = vmatpush2.msra.mxu0 0.0
  %275 = vmatprep.subr.mxu0 0.0
  %276 = vmatpush2.msra.mxu0 0.0
  %277 = vmatprep.subr.mxu0 0.0
  %278 = vmatpush2.msra.mxu0 0.0
  %279 = vmatprep.subr.mxu0 0.0
  %280 = vmatpush2.msra.mxu0 0.0
  %281 = vmatprep.subr.mxu0 0.0
  %282 = vmatpush2.msra.mxu0 0.0
  %283 = vmatprep.subr.mxu0 0.0
  %284 = vmatpush2.msra.mxu0 0.0
  %285 = vmatprep.subr.mxu0 0.0
  %286 = vmatpush2.msra.mxu0 0.0
  %287 = vmatprep.subr.mxu0 0.0
  %288 = vmatpush2.msra.mxu0 0.0
  %289 = vmatprep.mubr.f32.mxu0 0.0
  %290 = vmatmul.mubr.f32.gmra.mxu0 %v223
  %v291 = vpop.f32.mrf.mxu0
  %v292 = vadd.f32 %v64, %v291
  %v293 = vpop.f32.mrf.mxu0
  %v294 = vadd.f32 %v68, %v293
  %295 = vdwg.mxu0
  %s296 = scalar_lea.vmem %s0, 6
  %v297 = vld [vmem:[%s296] sm:$0x3]
  %v299 = vsel %vm69, %v297, 0
  %301 = vmatprep.subr.mxu0 0.0
  %302 = vmatpush1.msra.mxu0 0.0
  %303 = vmatprep.subr.mxu0 0.0
  %304 = vmatpush1.msra.mxu0 0.0
  %305 = vmatprep.subr.mxu0 0.0
  %306 = vmatpush1.msra.mxu0 0.0
  %307 = vmatprep.subr.mxu0 0.0
  %308 = vmatpush1.msra.mxu0 0.0
  %309 = vmatprep.subr.mxu0 0.0
  %310 = vmatpush1.msra.mxu0 0.0
  %311 = vmatprep.subr.mxu0 0.0
  %312 = vmatpush1.msra.mxu0 0.0
  %313 = vmatprep.subr.mxu0 0.0
  %314 = vmatpush1.msra.mxu0 0.0
  %315 = vmatprep.subr.mxu0 0.0
  %316 = vmatpush1.msra.mxu0 0.0
  %317 = vmatprep.subr.mxu0 0.0
  %318 = vmatpush1.msra.mxu0 0.0
  %319 = vmatprep.subr.mxu0 0.0
  %320 = vmatpush1.msra.mxu0 0.0
  %321 = vmatprep.subr.mxu0 0.0
  %322 = vmatpush1.msra.mxu0 0.0
  %323 = vmatprep.subr.mxu0 0.0
  %324 = vmatpush1.msra.mxu0 0.0
  %325 = vmatprep.subr.mxu0 0.0
  %326 = vmatpush1.msra.mxu0 0.0
  %327 = vmatprep.subr.mxu0 0.0
  %328 = vmatpush1.msra.mxu0 0.0
  %329 = vmatprep.subr.mxu0 0.0
  %330 = vmatpush1.msra.mxu0 0.0
  %331 = vmatprep.subr.mxu0 %v27
  %332 = vmatpush1.msra.mxu0 %v26
  %333 = vmatprep.subr.mxu0 0.0
  %334 = vmatpush2.msra.mxu0 0.0
  %335 = vmatprep.subr.mxu0 0.0
  %336 = vmatpush2.msra.mxu0 0.0
  %337 = vmatprep.subr.mxu0 0.0
  %338 = vmatpush2.msra.mxu0 0.0
  %339 = vmatprep.subr.mxu0 0.0
  %340 = vmatpush2.msra.mxu0 0.0
  %341 = vmatprep.subr.mxu0 0.0
  %342 = vmatpush2.msra.mxu0 0.0
  %343 = vmatprep.subr.mxu0 0.0
  %344 = vmatpush2.msra.mxu0 0.0
  %345 = vmatprep.subr.mxu0 0.0
  %346 = vmatpush2.msra.mxu0 0.0
  %347 = vmatprep.subr.mxu0 0.0
  %348 = vmatpush2.msra.mxu0 0.0
  %349 = vmatprep.subr.mxu0 0.0
  %350 = vmatpush2.msra.mxu0 0.0
  %351 = vmatprep.subr.mxu0 0.0
  %352 = vmatpush2.msra.mxu0 0.0
  %353 = vmatprep.subr.mxu0 0.0
  %354 = vmatpush2.msra.mxu0 0.0
  %355 = vmatprep.subr.mxu0 0.0
  %356 = vmatpush2.msra.mxu0 0.0
  %357 = vmatprep.subr.mxu0 0.0
  %358 = vmatpush2.msra.mxu0 0.0
  %359 = vmatprep.subr.mxu0 0.0
  %360 = vmatpush2.msra.mxu0 0.0
  %361 = vmatprep.subr.mxu0 0.0
  %362 = vmatpush2.msra.mxu0 0.0
  %363 = vmatprep.subr.mxu0 0.0
  %364 = vmatpush2.msra.mxu0 0.0
  %365 = vmatprep.mubr.f32.mxu0 0.0
  %366 = vmatmul.mubr.f32.gmra.mxu0 %v299
  %v367 = vpop.f32.mrf.mxu0
  %v368 = vadd.f32 %v64, %v367
  %v369 = vpop.f32.mrf.mxu0
  %v370 = vadd.f32 %v68, %v369
  %371 = vdwg.mxu0
  %s372 = scalar_lea.vmem %s0, 8
  %v373 = vld [vmem:[%s372] sm:$0x3]
  %v375 = vsel %vm69, %v373, 0
  %377 = vmatprep.subr.mxu0 0.0
  %378 = vmatpush1.msra.mxu0 0.0
  %379 = vmatprep.subr.mxu0 0.0
  %380 = vmatpush1.msra.mxu0 0.0
  %381 = vmatprep.subr.mxu0 0.0
  %382 = vmatpush1.msra.mxu0 0.0
  %383 = vmatprep.subr.mxu0 0.0
  %384 = vmatpush1.msra.mxu0 0.0
  %385 = vmatprep.subr.mxu0 0.0
  %386 = vmatpush1.msra.mxu0 0.0
  %387 = vmatprep.subr.mxu0 0.0
  %388 = vmatpush1.msra.mxu0 0.0
  %389 = vmatprep.subr.mxu0 0.0
  %390 = vmatpush1.msra.mxu0 0.0
  %391 = vmatprep.subr.mxu0 0.0
  %392 = vmatpush1.msra.mxu0 0.0
  %393 = vmatprep.subr.mxu0 0.0
  %394 = vmatpush1.msra.mxu0 0.0
  %395 = vmatprep.subr.mxu0 0.0
  %396 = vmatpush1.msra.mxu0 0.0
  %397 = vmatprep.subr.mxu0 0.0
  %398 = vmatpush1.msra.mxu0 0.0
  %399 = vmatprep.subr.mxu0 0.0
  %400 = vmatpush1.msra.mxu0 0.0
  %401 = vmatprep.subr.mxu0 0.0
  %402 = vmatpush1.msra.mxu0 0.0
  %403 = vmatprep.subr.mxu0 0.0
  %404 = vmatpush1.msra.mxu0 0.0
  %405 = vmatprep.subr.mxu0 0.0
  %406 = vmatpush1.msra.mxu0 0.0
  %407 = vmatprep.subr.mxu0 %v27
  %408 = vmatpush1.msra.mxu0 %v26
  %409 = vmatprep.subr.mxu0 0.0
  %410 = vmatpush2.msra.mxu0 0.0
  %411 = vmatprep.subr.mxu0 0.0
  %412 = vmatpush2.msra.mxu0 0.0
  %413 = vmatprep.subr.mxu0 0.0
  %414 = vmatpush2.msra.mxu0 0.0
  %415 = vmatprep.subr.mxu0 0.0
  %416 = vmatpush2.msra.mxu0 0.0
  %417 = vmatprep.subr.mxu0 0.0
  %418 = vmatpush2.msra.mxu0 0.0
  %419 = vmatprep.subr.mxu0 0.0
  %420 = vmatpush2.msra.mxu0 0.0
  %421 = vmatprep.subr.mxu0 0.0
  %422 = vmatpush2.msra.mxu0 0.0
  %423 = vmatprep.subr.mxu0 0.0
  %424 = vmatpush2.msra.mxu0 0.0
  %425 = vmatprep.subr.mxu0 0.0
  %426 = vmatpush2.msra.mxu0 0.0
  %427 = vmatprep.subr.mxu0 0.0
  %428 = vmatpush2.msra.mxu0 0.0
  %429 = vmatprep.subr.mxu0 0.0
  %430 = vmatpush2.msra.mxu0 0.0
  %431 = vmatprep.subr.mxu0 0.0
  %432 = vmatpush2.msra.mxu0 0.0
  %433 = vmatprep.subr.mxu0 0.0
  %434 = vmatpush2.msra.mxu0 0.0
  %435 = vmatprep.subr.mxu0 0.0
  %436 = vmatpush2.msra.mxu0 0.0
  %437 = vmatprep.subr.mxu0 0.0
  %438 = vmatpush2.msra.mxu0 0.0
  %439 = vmatprep.subr.mxu0 0.0
  %440 = vmatpush2.msra.mxu0 0.0
  %441 = vmatprep.mubr.f32.mxu0 0.0
  %442 = vmatmul.mubr.f32.gmra.mxu0 %v375
  %v443 = vpop.f32.mrf.mxu0
  %v444 = vadd.f32 %v64, %v443
  %v445 = vpop.f32.mrf.mxu0
  %v446 = vadd.f32 %v68, %v445
  %447 = vdwg.mxu0
  %s448 = scalar_lea.vmem %s0, 10
  %v449 = vld [vmem:[%s448] sm:$0x3]
  %v451 = vsel %vm69, %v449, 0
  %453 = vmatprep.subr.mxu0 0.0
  %454 = vmatpush1.msra.mxu0 0.0
  %455 = vmatprep.subr.mxu0 0.0
  %456 = vmatpush1.msra.mxu0 0.0
  %457 = vmatprep.subr.mxu0 0.0
  %458 = vmatpush1.msra.mxu0 0.0
  %459 = vmatprep.subr.mxu0 0.0
  %460 = vmatpush1.msra.mxu0 0.0
  %461 = vmatprep.subr.mxu0 0.0
  %462 = vmatpush1.msra.mxu0 0.0
  %463 = vmatprep.subr.mxu0 0.0
  %464 = vmatpush1.msra.mxu0 0.0
  %465 = vmatprep.subr.mxu0 0.0
  %466 = vmatpush1.msra.mxu0 0.0
  %467 = vmatprep.subr.mxu0 0.0
  %468 = vmatpush1.msra.mxu0 0.0
  %469 = vmatprep.subr.mxu0 0.0
  %470 = vmatpush1.msra.mxu0 0.0
  %471 = vmatprep.subr.mxu0 0.0
  %472 = vmatpush1.msra.mxu0 0.0
  %473 = vmatprep.subr.mxu0 0.0
  %474 = vmatpush1.msra.mxu0 0.0
  %475 = vmatprep.subr.mxu0 0.0
  %476 = vmatpush1.msra.mxu0 0.0
  %477 = vmatprep.subr.mxu0 0.0
  %478 = vmatpush1.msra.mxu0 0.0
  %479 = vmatprep.subr.mxu0 0.0
  %480 = vmatpush1.msra.mxu0 0.0
  %481 = vmatprep.subr.mxu0 0.0
  %482 = vmatpush1.msra.mxu0 0.0
  %483 = vmatprep.subr.mxu0 %v27
  %484 = vmatpush1.msra.mxu0 %v26
  %485 = vmatprep.subr.mxu0 0.0
  %486 = vmatpush2.msra.mxu0 0.0
  %487 = vmatprep.subr.mxu0 0.0
  %488 = vmatpush2.msra.mxu0 0.0
  %489 = vmatprep.subr.mxu0 0.0
  %490 = vmatpush2.msra.mxu0 0.0
  %491 = vmatprep.subr.mxu0 0.0
  %492 = vmatpush2.msra.mxu0 0.0
  %493 = vmatprep.subr.mxu0 0.0
  %494 = vmatpush2.msra.mxu0 0.0
  %495 = vmatprep.subr.mxu0 0.0
  %496 = vmatpush2.msra.mxu0 0.0
  %497 = vmatprep.subr.mxu0 0.0
  %498 = vmatpush2.msra.mxu0 0.0
  %499 = vmatprep.subr.mxu0 0.0
  %500 = vmatpush2.msra.mxu0 0.0
  %501 = vmatprep.subr.mxu0 0.0
  %502 = vmatpush2.msra.mxu0 0.0
  %503 = vmatprep.subr.mxu0 0.0
  %504 = vmatpush2.msra.mxu0 0.0
  %505 = vmatprep.subr.mxu0 0.0
  %506 = vmatpush2.msra.mxu0 0.0
  %507 = vmatprep.subr.mxu0 0.0
  %508 = vmatpush2.msra.mxu0 0.0
  %509 = vmatprep.subr.mxu0 0.0
  %510 = vmatpush2.msra.mxu0 0.0
  %511 = vmatprep.subr.mxu0 0.0
  %512 = vmatpush2.msra.mxu0 0.0
  %513 = vmatprep.subr.mxu0 0.0
  %514 = vmatpush2.msra.mxu0 0.0
  %515 = vmatprep.subr.mxu0 0.0
  %516 = vmatpush2.msra.mxu0 0.0
  %517 = vmatprep.mubr.f32.mxu0 0.0
  %518 = vmatmul.mubr.f32.gmra.mxu0 %v451
  %v519 = vpop.f32.mrf.mxu0
  %v520 = vadd.f32 %v64, %v519
  %v521 = vpop.f32.mrf.mxu0
  %v522 = vadd.f32 %v68, %v521
  %523 = vdwg.mxu0
  %s524 = scalar_lea.vmem %s0, 12
  %v525 = vld [vmem:[%s524] sm:$0x3]
  %v527 = vsel %vm69, %v525, 0
  %529 = vmatprep.subr.mxu0 0.0
  %530 = vmatpush1.msra.mxu0 0.0
  %531 = vmatprep.subr.mxu0 0.0
  %532 = vmatpush1.msra.mxu0 0.0
  %533 = vmatprep.subr.mxu0 0.0
  %534 = vmatpush1.msra.mxu0 0.0
  %535 = vmatprep.subr.mxu0 0.0
  %536 = vmatpush1.msra.mxu0 0.0
  %537 = vmatprep.subr.mxu0 0.0
  %538 = vmatpush1.msra.mxu0 0.0
  %539 = vmatprep.subr.mxu0 0.0
  %540 = vmatpush1.msra.mxu0 0.0
  %541 = vmatprep.subr.mxu0 0.0
  %542 = vmatpush1.msra.mxu0 0.0
  %543 = vmatprep.subr.mxu0 0.0
  %544 = vmatpush1.msra.mxu0 0.0
  %545 = vmatprep.subr.mxu0 0.0
  %546 = vmatpush1.msra.mxu0 0.0
  %547 = vmatprep.subr.mxu0 0.0
  %548 = vmatpush1.msra.mxu0 0.0
  %549 = vmatprep.subr.mxu0 0.0
  %550 = vmatpush1.msra.mxu0 0.0
  %551 = vmatprep.subr.mxu0 0.0
  %552 = vmatpush1.msra.mxu0 0.0
  %553 = vmatprep.subr.mxu0 0.0
  %554 = vmatpush1.msra.mxu0 0.0
  %555 = vmatprep.subr.mxu0 0.0
  %556 = vmatpush1.msra.mxu0 0.0
  %557 = vmatprep.subr.mxu0 0.0
  %558 = vmatpush1.msra.mxu0 0.0
  %559 = vmatprep.subr.mxu0 %v27
  %560 = vmatpush1.msra.mxu0 %v26
  %561 = vmatprep.subr.mxu0 0.0
  %562 = vmatpush2.msra.mxu0 0.0
  %563 = vmatprep.subr.mxu0 0.0
  %564 = vmatpush2.msra.mxu0 0.0
  %565 = vmatprep.subr.mxu0 0.0
  %566 = vmatpush2.msra.mxu0 0.0
  %567 = vmatprep.subr.mxu0 0.0
  %568 = vmatpush2.msra.mxu0 0.0
  %569 = vmatprep.subr.mxu0 0.0
  %570 = vmatpush2.msra.mxu0 0.0
  %571 = vmatprep.subr.mxu0 0.0
  %572 = vmatpush2.msra.mxu0 0.0
  %573 = vmatprep.subr.mxu0 0.0
  %574 = vmatpush2.msra.mxu0 0.0
  %575 = vmatprep.subr.mxu0 0.0
  %576 = vmatpush2.msra.mxu0 0.0
  %577 = vmatprep.subr.mxu0 0.0
  %578 = vmatpush2.msra.mxu0 0.0
  %579 = vmatprep.subr.mxu0 0.0
  %580 = vmatpush2.msra.mxu0 0.0
  %581 = vmatprep.subr.mxu0 0.0
  %582 = vmatpush2.msra.mxu0 0.0
  %583 = vmatprep.subr.mxu0 0.0
  %584 = vmatpush2.msra.mxu0 0.0
  %585 = vmatprep.subr.mxu0 0.0
  %586 = vmatpush2.msra.mxu0 0.0
  %587 = vmatprep.subr.mxu0 0.0
  %588 = vmatpush2.msra.mxu0 0.0
  %589 = vmatprep.subr.mxu0 0.0
  %590 = vmatpush2.msra.mxu0 0.0
  %591 = vmatprep.subr.mxu0 0.0
  %592 = vmatpush2.msra.mxu0 0.0
  %593 = vmatprep.mubr.f32.mxu0 0.0
  %594 = vmatmul.mubr.f32.gmra.mxu0 %v527
  %v595 = vpop.f32.mrf.mxu0
  %v596 = vadd.f32 %v64, %v595
  %v597 = vpop.f32.mrf.mxu0
  %v598 = vadd.f32 %v68, %v597
  %599 = vdwg.mxu0
  %s600 = scalar_lea.vmem %s0, 14
  %v601 = vld [vmem:[%s600] sm:$0x3]
  %v603 = vsel %vm69, %v601, 0
  %605 = vmatprep.subr.mxu0 0.0
  %606 = vmatpush1.msra.mxu0 0.0
  %607 = vmatprep.subr.mxu0 0.0
  %608 = vmatpush1.msra.mxu0 0.0
  %609 = vmatprep.subr.mxu0 0.0
  %610 = vmatpush1.msra.mxu0 0.0
  %611 = vmatprep.subr.mxu0 0.0
  %612 = vmatpush1.msra.mxu0 0.0
  %613 = vmatprep.subr.mxu0 0.0
  %614 = vmatpush1.msra.mxu0 0.0
  %615 = vmatprep.subr.mxu0 0.0
  %616 = vmatpush1.msra.mxu0 0.0
  %617 = vmatprep.subr.mxu0 0.0
  %618 = vmatpush1.msra.mxu0 0.0
  %619 = vmatprep.subr.mxu0 0.0
  %620 = vmatpush1.msra.mxu0 0.0
  %621 = vmatprep.subr.mxu0 0.0
  %622 = vmatpush1.msra.mxu0 0.0
  %623 = vmatprep.subr.mxu0 0.0
  %624 = vmatpush1.msra.mxu0 0.0
  %625 = vmatprep.subr.mxu0 0.0
  %626 = vmatpush1.msra.mxu0 0.0
  %627 = vmatprep.subr.mxu0 0.0
  %628 = vmatpush1.msra.mxu0 0.0
  %629 = vmatprep.subr.mxu0 0.0
  %630 = vmatpush1.msra.mxu0 0.0
  %631 = vmatprep.subr.mxu0 0.0
  %632 = vmatpush1.msra.mxu0 0.0
  %633 = vmatprep.subr.mxu0 0.0
  %634 = vmatpush1.msra.mxu0 0.0
  %635 = vmatprep.subr.mxu0 %v27
  %636 = vmatpush1.msra.mxu0 %v26
  %637 = vmatprep.subr.mxu0 0.0
  %638 = vmatpush2.msra.mxu0 0.0
  %639 = vmatprep.subr.mxu0 0.0
  %640 = vmatpush2.msra.mxu0 0.0
  %641 = vmatprep.subr.mxu0 0.0
  %642 = vmatpush2.msra.mxu0 0.0
  %643 = vmatprep.subr.mxu0 0.0
  %644 = vmatpush2.msra.mxu0 0.0
  %645 = vmatprep.subr.mxu0 0.0
  %646 = vmatpush2.msra.mxu0 0.0
  %647 = vmatprep.subr.mxu0 0.0
  %648 = vmatpush2.msra.mxu0 0.0
  %649 = vmatprep.subr.mxu0 0.0
  %650 = vmatpush2.msra.mxu0 0.0
  %651 = vmatprep.subr.mxu0 0.0
  %652 = vmatpush2.msra.mxu0 0.0
  %653 = vmatprep.subr.mxu0 0.0
  %654 = vmatpush2.msra.mxu0 0.0
  %655 = vmatprep.subr.mxu0 0.0
  %656 = vmatpush2.msra.mxu0 0.0
  %657 = vmatprep.subr.mxu0 0.0
  %658 = vmatpush2.msra.mxu0 0.0
  %659 = vmatprep.subr.mxu0 0.0
  %660 = vmatpush2.msra.mxu0 0.0
  %661 = vmatprep.subr.mxu0 0.0
  %662 = vmatpush2.msra.mxu0 0.0
  %663 = vmatprep.subr.mxu0 0.0
  %664 = vmatpush2.msra.mxu0 0.0
  %665 = vmatprep.subr.mxu0 0.0
  %666 = vmatpush2.msra.mxu0 0.0
  %667 = vmatprep.subr.mxu0 0.0
  %668 = vmatpush2.msra.mxu0 0.0
  %669 = vmatprep.mubr.f32.mxu0 0.0
  %670 = vmatmul.mubr.f32.gmra.mxu0 %v603
  %v671 = vpop.f32.mrf.mxu0
  %v672 = vadd.f32 %v64, %v671
  %v673 = vpop.f32.mrf.mxu0
  %v674 = vadd.f32 %v68, %v673
  %675 = vdwg.mxu0
  %v676 = vld [vmem:[%s1] sm:$0x3]
  %s677 = scalar_lea.vmem %s1, 2
  %v678 = vld [vmem:[%s677] sm:$0x3]
  %s679 = scalar_lea.vmem %s1, 4
  %v680 = vld [vmem:[%s679] sm:$0x3]
  %s681 = scalar_lea.vmem %s1, 6
  %v682 = vld [vmem:[%s681] sm:$0x3]
  %s683 = scalar_lea.vmem %s1, 8
  %v684 = vld [vmem:[%s683] sm:$0x3]
  %s685 = scalar_lea.vmem %s1, 10
  %v686 = vld [vmem:[%s685] sm:$0x3]
  %s687 = scalar_lea.vmem %s1, 12
  %v688 = vld [vmem:[%s687] sm:$0x3]
  %s689 = scalar_lea.vmem %s1, 14
  %v690 = vld [vmem:[%s689] sm:$0x3]
  %v691 = vlaneseq
  %v692 = vshrl.u32 %v691, 7
  %v693 = vsub.s32 0, %v692
  %v694 = vrot.slane %v46, %v693
  %v695 = vlaneseq
  %v696 = vshrl.u32 %v695, 7
  %v697 = vsub.s32 0, %v696
  %v698 = vrot.slane %v47, %v697
  %vm699 = vcmask 523264
  %v701 = vsel %vm699, 0.0, 0
  %703 = vmatprep.subr.mxu0 0.0
  %704 = vmatpush1.msra.mxu0 0.0
  %705 = vmatprep.subr.mxu0 0.0
  %706 = vmatpush1.msra.mxu0 0.0
  %707 = vmatprep.subr.mxu0 0.0
  %708 = vmatpush1.msra.mxu0 0.0
  %709 = vmatprep.subr.mxu0 0.0
  %710 = vmatpush1.msra.mxu0 0.0
  %711 = vmatprep.subr.mxu0 0.0
  %712 = vmatpush1.msra.mxu0 0.0
  %713 = vmatprep.subr.mxu0 0.0
  %714 = vmatpush1.msra.mxu0 0.0
  %715 = vmatprep.subr.mxu0 0.0
  %716 = vmatpush1.msra.mxu0 0.0
  %717 = vmatprep.subr.mxu0 0.0
  %718 = vmatpush1.msra.mxu0 0.0
  %719 = vmatprep.subr.mxu0 %v45
  %720 = vmatpush1.msra.mxu0 %v44
  %721 = vmatprep.subr.mxu0 %v43
  %722 = vmatpush1.msra.mxu0 %v42
  %723 = vmatprep.subr.mxu0 %v41
  %724 = vmatpush1.msra.mxu0 %v40
  %725 = vmatprep.subr.mxu0 %v39
  %726 = vmatpush1.msra.mxu0 %v38
  %727 = vmatprep.subr.mxu0 %v37
  %728 = vmatpush1.msra.mxu0 %v36
  %729 = vmatprep.subr.mxu0 %v35
  %730 = vmatpush1.msra.mxu0 %v34
  %731 = vmatprep.subr.mxu0 %v33
  %732 = vmatpush1.msra.mxu0 %v32
  %733 = vmatprep.subr.mxu0 %v31
  %734 = vmatpush1.msra.mxu0 %v30
  %735 = vmatprep.subr.mxu0 0.0
  %736 = vmatpush2.msra.mxu0 0.0
  %737 = vmatprep.subr.mxu0 0.0
  %738 = vmatpush2.msra.mxu0 0.0
  %739 = vmatprep.subr.mxu0 0.0
  %740 = vmatpush2.msra.mxu0 0.0
  %741 = vmatprep.subr.mxu0 0.0
  %742 = vmatpush2.msra.mxu0 0.0
  %743 = vmatprep.subr.mxu0 0.0
  %744 = vmatpush2.msra.mxu0 0.0
  %745 = vmatprep.subr.mxu0 0.0
  %746 = vmatpush2.msra.mxu0 0.0
  %747 = vmatprep.subr.mxu0 0.0
  %748 = vmatpush2.msra.mxu0 0.0
  %749 = vmatprep.subr.mxu0 0.0
  %750 = vmatpush2.msra.mxu0 0.0
  %751 = vmatprep.subr.mxu0 0.0
  %752 = vmatpush2.msra.mxu0 0.0
  %753 = vmatprep.subr.mxu0 0.0
  %754 = vmatpush2.msra.mxu0 0.0
  %755 = vmatprep.subr.mxu0 0.0
  %756 = vmatpush2.msra.mxu0 0.0
  %757 = vmatprep.subr.mxu0 0.0
  %758 = vmatpush2.msra.mxu0 0.0
  %759 = vmatprep.subr.mxu0 0.0
  %760 = vmatpush2.msra.mxu0 0.0
  %761 = vmatprep.subr.mxu0 0.0
  %762 = vmatpush2.msra.mxu0 0.0
  %763 = vmatprep.subr.mxu0 0.0
  %764 = vmatpush2.msra.mxu0 0.0
  %765 = vmatprep.subr.mxu0 0.0
  %766 = vmatpush2.msra.mxu0 0.0
  %767 = vmatprep.mubr.f32.mxu0 0.0
  %768 = vmatmul.mubr.f32.gmra.mxu0 %v701
  %v769 = vpop.f32.mrf.mxu0
  %v770 = vadd.f32 %v694, %v769
  %v771 = vpop.f32.mrf.mxu0
  %v772 = vadd.f32 %v698, %v771
  %773 = vdwg.mxu0
  %v774 = vadd.f32 %v140, %v770
  %v775 = vxor.u32 %v774, 2147483648
  %v776 = vmul.f32 %v775, 1.442695
  %v777 = vpow.pop %v776
  %v778 = vadd.f32 %v777, 1.0
  %v779 = vrcp.pop %v778
  %v780 = vmul.f32 1.0, %v779
  %v781 = vmul.f32 %v780, %v772
  %v782 = vadd.f32 %v142, %v781
  %v783 = vtanh.pop %v782
  %v784 = vsub.f32 1.0, %v780
  %786 = vrot.lane.b32.xlu0 %v783, 64
  %v787 = vpop.permute.xlu0 %786
  %v789 = vmul.f32 %v784, %v787
  %v790 = vmul.f32 %v780, 0.0
  %v791 = vadd.f32 %v789, %v790
  %793 = vrot.lane.b32.xlu0 %v791, 64
  %v794 = vpop.permute.xlu0 %793
  %v796 = vmul.f32 %v676, %v794
  %v797 = vadd.f32 %v796, 0.0
  %v799 = vsel %vm699, %v797, 0
  %801 = vmatprep.subr.mxu0 0.0
  %802 = vmatpush1.msra.mxu0 0.0
  %803 = vmatprep.subr.mxu0 0.0
  %804 = vmatpush1.msra.mxu0 0.0
  %805 = vmatprep.subr.mxu0 0.0
  %806 = vmatpush1.msra.mxu0 0.0
  %807 = vmatprep.subr.mxu0 0.0
  %808 = vmatpush1.msra.mxu0 0.0
  %809 = vmatprep.subr.mxu0 0.0
  %810 = vmatpush1.msra.mxu0 0.0
  %811 = vmatprep.subr.mxu0 0.0
  %812 = vmatpush1.msra.mxu0 0.0
  %813 = vmatprep.subr.mxu0 0.0
  %814 = vmatpush1.msra.mxu0 0.0
  %815 = vmatprep.subr.mxu0 0.0
  %816 = vmatpush1.msra.mxu0 0.0
  %817 = vmatprep.subr.mxu0 %v45
  %818 = vmatpush1.msra.mxu0 %v44
  %819 = vmatprep.subr.mxu0 %v43
  %820 = vmatpush1.msra.mxu0 %v42
  %821 = vmatprep.subr.mxu0 %v41
  %822 = vmatpush1.msra.mxu0 %v40
  %823 = vmatprep.subr.mxu0 %v39
  %824 = vmatpush1.msra.mxu0 %v38
  %825 = vmatprep.subr.mxu0 %v37
  %826 = vmatpush1.msra.mxu0 %v36
  %827 = vmatprep.subr.mxu0 %v35
  %828 = vmatpush1.msra.mxu0 %v34
  %829 = vmatprep.subr.mxu0 %v33
  %830 = vmatpush1.msra.mxu0 %v32
  %831 = vmatprep.subr.mxu0 %v31
  %832 = vmatpush1.msra.mxu0 %v30
  %833 = vmatprep.subr.mxu0 0.0
  %834 = vmatpush2.msra.mxu0 0.0
  %835 = vmatprep.subr.mxu0 0.0
  %836 = vmatpush2.msra.mxu0 0.0
  %837 = vmatprep.subr.mxu0 0.0
  %838 = vmatpush2.msra.mxu0 0.0
  %839 = vmatprep.subr.mxu0 0.0
  %840 = vmatpush2.msra.mxu0 0.0
  %841 = vmatprep.subr.mxu0 0.0
  %842 = vmatpush2.msra.mxu0 0.0
  %843 = vmatprep.subr.mxu0 0.0
  %844 = vmatpush2.msra.mxu0 0.0
  %845 = vmatprep.subr.mxu0 0.0
  %846 = vmatpush2.msra.mxu0 0.0
  %847 = vmatprep.subr.mxu0 0.0
  %848 = vmatpush2.msra.mxu0 0.0
  %849 = vmatprep.subr.mxu0 0.0
  %850 = vmatpush2.msra.mxu0 0.0
  %851 = vmatprep.subr.mxu0 0.0
  %852 = vmatpush2.msra.mxu0 0.0
  %853 = vmatprep.subr.mxu0 0.0
  %854 = vmatpush2.msra.mxu0 0.0
  %855 = vmatprep.subr.mxu0 0.0
  %856 = vmatpush2.msra.mxu0 0.0
  %857 = vmatprep.subr.mxu0 0.0
  %858 = vmatpush2.msra.mxu0 0.0
  %859 = vmatprep.subr.mxu0 0.0
  %860 = vmatpush2.msra.mxu0 0.0
  %861 = vmatprep.subr.mxu0 0.0
  %862 = vmatpush2.msra.mxu0 0.0
  %863 = vmatprep.subr.mxu0 0.0
  %864 = vmatpush2.msra.mxu0 0.0
  %865 = vmatprep.mubr.f32.mxu0 0.0
  %866 = vmatmul.mubr.f32.gmra.mxu0 %v799
  %v867 = vpop.f32.mrf.mxu0
  %v868 = vadd.f32 %v694, %v867
  %v869 = vpop.f32.mrf.mxu0
  %v870 = vadd.f32 %v698, %v869
  %871 = vdwg.mxu0
  %v872 = vadd.f32 %v216, %v868
  %v873 = vxor.u32 %v872, 2147483648
  %v874 = vmul.f32 %v873, 1.442695
  %v875 = vpow.pop %v874
  %v876 = vadd.f32 %v875, 1.0
  %v877 = vrcp.pop %v876
  %v878 = vmul.f32 1.0, %v877
  %v879 = vmul.f32 %v878, %v870
  %v880 = vadd.f32 %v218, %v879
  %v881 = vtanh.pop %v880
  %v882 = vsub.f32 1.0, %v878
  %884 = vrot.lane.b32.xlu0 %v881, 64
  %v885 = vpop.permute.xlu0 %884
  %v887 = vmul.f32 %v882, %v885
  %888 = vrot.lane.b32.xlu0 %v797, 64
  %v889 = vpop.permute.xlu0 %888
  %v891 = vmul.f32 %v878, %v889
  %v892 = vadd.f32 %v887, %v891
  %v893 = vsub.f32 %v892, %v889
  %895 = vrot.lane.b32.xlu0 %v893, 64
  %v896 = vpop.permute.xlu0 %895
  %v898 = vmul.f32 %v678, %v896
  %v899 = vadd.f32 %v797, %v898
  %v901 = vsel %vm699, %v899, 0
  %903 = vmatprep.subr.mxu0 0.0
  %904 = vmatpush1.msra.mxu0 0.0
  %905 = vmatprep.subr.mxu0 0.0
  %906 = vmatpush1.msra.mxu0 0.0
  %907 = vmatprep.subr.mxu0 0.0
  %908 = vmatpush1.msra.mxu0 0.0
  %909 = vmatprep.subr.mxu0 0.0
  %910 = vmatpush1.msra.mxu0 0.0
  %911 = vmatprep.subr.mxu0 0.0
  %912 = vmatpush1.msra.mxu0 0.0
  %913 = vmatprep.subr.mxu0 0.0
  %914 = vmatpush1.msra.mxu0 0.0
  %915 = vmatprep.subr.mxu0 0.0
  %916 = vmatpush1.msra.mxu0 0.0
  %917 = vmatprep.subr.mxu0 0.0
  %918 = vmatpush1.msra.mxu0 0.0
  %919 = vmatprep.subr.mxu0 %v45
  %920 = vmatpush1.msra.mxu0 %v44
  %921 = vmatprep.subr.mxu0 %v43
  %922 = vmatpush1.msra.mxu0 %v42
  %923 = vmatprep.subr.mxu0 %v41
  %924 = vmatpush1.msra.mxu0 %v40
  %925 = vmatprep.subr.mxu0 %v39
  %926 = vmatpush1.msra.mxu0 %v38
  %927 = vmatprep.subr.mxu0 %v37
  %928 = vmatpush1.msra.mxu0 %v36
  %929 = vmatprep.subr.mxu0 %v35
  %930 = vmatpush1.msra.mxu0 %v34
  %931 = vmatprep.subr.mxu0 %v33
  %932 = vmatpush1.msra.mxu0 %v32
  %933 = vmatprep.subr.mxu0 %v31
  %934 = vmatpush1.msra.mxu0 %v30
  %935 = vmatprep.subr.mxu0 0.0
  %936 = vmatpush2.msra.mxu0 0.0
  %937 = vmatprep.subr.mxu0 0.0
  %938 = vmatpush2.msra.mxu0 0.0
  %939 = vmatprep.subr.mxu0 0.0
  %940 = vmatpush2.msra.mxu0 0.0
  %941 = vmatprep.subr.mxu0 0.0
  %942 = vmatpush2.msra.mxu0 0.0
  %943 = vmatprep.subr.mxu0 0.0
  %944 = vmatpush2.msra.mxu0 0.0
  %945 = vmatprep.subr.mxu0 0.0
  %946 = vmatpush2.msra.mxu0 0.0
  %947 = vmatprep.subr.mxu0 0.0
  %948 = vmatpush2.msra.mxu0 0.0
  %949 = vmatprep.subr.mxu0 0.0
  %950 = vmatpush2.msra.mxu0 0.0
  %951 = vmatprep.subr.mxu0 0.0
  %952 = vmatpush2.msra.mxu0 0.0
  %953 = vmatprep.subr.mxu0 0.0
  %954 = vmatpush2.msra.mxu0 0.0
  %955 = vmatprep.subr.mxu0 0.0
  %956 = vmatpush2.msra.mxu0 0.0
  %957 = vmatprep.subr.mxu0 0.0
  %958 = vmatpush2.msra.mxu0 0.0
  %959 = vmatprep.subr.mxu0 0.0
  %960 = vmatpush2.msra.mxu0 0.0
  %961 = vmatprep.subr.mxu0 0.0
  %962 = vmatpush2.msra.mxu0 0.0
  %963 = vmatprep.subr.mxu0 0.0
  %964 = vmatpush2.msra.mxu0 0.0
  %965 = vmatprep.subr.mxu0 0.0
  %966 = vmatpush2.msra.mxu0 0.0
  %967 = vmatprep.mubr.f32.mxu0 0.0
  %968 = vmatmul.mubr.f32.gmra.mxu0 %v901
  %v969 = vpop.f32.mrf.mxu0
  %v970 = vadd.f32 %v694, %v969
  %v971 = vpop.f32.mrf.mxu0
  %v972 = vadd.f32 %v698, %v971
  %973 = vdwg.mxu0
  %v974 = vadd.f32 %v292, %v970
  %v975 = vxor.u32 %v974, 2147483648
  %v976 = vmul.f32 %v975, 1.442695
  %v977 = vpow.pop %v976
  %v978 = vadd.f32 %v977, 1.0
  %v979 = vrcp.pop %v978
  %v980 = vmul.f32 1.0, %v979
  %v981 = vmul.f32 %v980, %v972
  %v982 = vadd.f32 %v294, %v981
  %v983 = vtanh.pop %v982
  %v984 = vsub.f32 1.0, %v980
  %986 = vrot.lane.b32.xlu0 %v983, 64
  %v987 = vpop.permute.xlu0 %986
  %v989 = vmul.f32 %v984, %v987
  %990 = vrot.lane.b32.xlu0 %v899, 64
  %v991 = vpop.permute.xlu0 %990
  %v993 = vmul.f32 %v980, %v991
  %v994 = vadd.f32 %v989, %v993
  %v995 = vsub.f32 %v994, %v991
  %997 = vrot.lane.b32.xlu0 %v995, 64
  %v998 = vpop.permute.xlu0 %997
  %v1000 = vmul.f32 %v680, %v998
  %v1001 = vadd.f32 %v899, %v1000
  %v1003 = vsel %vm699, %v1001, 0
  %1005 = vmatprep.subr.mxu0 0.0
  %1006 = vmatpush1.msra.mxu0 0.0
  %1007 = vmatprep.subr.mxu0 0.0
  %1008 = vmatpush1.msra.mxu0 0.0
  %1009 = vmatprep.subr.mxu0 0.0
  %1010 = vmatpush1.msra.mxu0 0.0
  %1011 = vmatprep.subr.mxu0 0.0
  %1012 = vmatpush1.msra.mxu0 0.0
  %1013 = vmatprep.subr.mxu0 0.0
  %1014 = vmatpush1.msra.mxu0 0.0
  %1015 = vmatprep.subr.mxu0 0.0
  %1016 = vmatpush1.msra.mxu0 0.0
  %1017 = vmatprep.subr.mxu0 0.0
  %1018 = vmatpush1.msra.mxu0 0.0
  %1019 = vmatprep.subr.mxu0 0.0
  %1020 = vmatpush1.msra.mxu0 0.0
  %1021 = vmatprep.subr.mxu0 %v45
  %1022 = vmatpush1.msra.mxu0 %v44
  %1023 = vmatprep.subr.mxu0 %v43
  %1024 = vmatpush1.msra.mxu0 %v42
  %1025 = vmatprep.subr.mxu0 %v41
  %1026 = vmatpush1.msra.mxu0 %v40
  %1027 = vmatprep.subr.mxu0 %v39
  %1028 = vmatpush1.msra.mxu0 %v38
  %1029 = vmatprep.subr.mxu0 %v37
  %1030 = vmatpush1.msra.mxu0 %v36
  %1031 = vmatprep.subr.mxu0 %v35
  %1032 = vmatpush1.msra.mxu0 %v34
  %1033 = vmatprep.subr.mxu0 %v33
  %1034 = vmatpush1.msra.mxu0 %v32
  %1035 = vmatprep.subr.mxu0 %v31
  %1036 = vmatpush1.msra.mxu0 %v30
  %1037 = vmatprep.subr.mxu0 0.0
  %1038 = vmatpush2.msra.mxu0 0.0
  %1039 = vmatprep.subr.mxu0 0.0
  %1040 = vmatpush2.msra.mxu0 0.0
  %1041 = vmatprep.subr.mxu0 0.0
  %1042 = vmatpush2.msra.mxu0 0.0
  %1043 = vmatprep.subr.mxu0 0.0
  %1044 = vmatpush2.msra.mxu0 0.0
  %1045 = vmatprep.subr.mxu0 0.0
  %1046 = vmatpush2.msra.mxu0 0.0
  %1047 = vmatprep.subr.mxu0 0.0
  %1048 = vmatpush2.msra.mxu0 0.0
  %1049 = vmatprep.subr.mxu0 0.0
  %1050 = vmatpush2.msra.mxu0 0.0
  %1051 = vmatprep.subr.mxu0 0.0
  %1052 = vmatpush2.msra.mxu0 0.0
  %1053 = vmatprep.subr.mxu0 0.0
  %1054 = vmatpush2.msra.mxu0 0.0
  %1055 = vmatprep.subr.mxu0 0.0
  %1056 = vmatpush2.msra.mxu0 0.0
  %1057 = vmatprep.subr.mxu0 0.0
  %1058 = vmatpush2.msra.mxu0 0.0
  %1059 = vmatprep.subr.mxu0 0.0
  %1060 = vmatpush2.msra.mxu0 0.0
  %1061 = vmatprep.subr.mxu0 0.0
  %1062 = vmatpush2.msra.mxu0 0.0
  %1063 = vmatprep.subr.mxu0 0.0
  %1064 = vmatpush2.msra.mxu0 0.0
  %1065 = vmatprep.subr.mxu0 0.0
  %1066 = vmatpush2.msra.mxu0 0.0
  %1067 = vmatprep.subr.mxu0 0.0
  %1068 = vmatpush2.msra.mxu0 0.0
  %1069 = vmatprep.mubr.f32.mxu0 0.0
  %1070 = vmatmul.mubr.f32.gmra.mxu0 %v1003
  %v1071 = vpop.f32.mrf.mxu0
  %v1072 = vadd.f32 %v694, %v1071
  %v1073 = vpop.f32.mrf.mxu0
  %v1074 = vadd.f32 %v698, %v1073
  %1075 = vdwg.mxu0
  %v1076 = vadd.f32 %v368, %v1072
  %v1077 = vxor.u32 %v1076, 2147483648
  %v1078 = vmul.f32 %v1077, 1.442695
  %v1079 = vpow.pop %v1078
  %v1080 = vadd.f32 %v1079, 1.0
  %v1081 = vrcp.pop %v1080
  %v1082 = vmul.f32 1.0, %v1081
  %v1083 = vmul.f32 %v1082, %v1074
  %v1084 = vadd.f32 %v370, %v1083
  %v1085 = vtanh.pop %v1084
  %v1086 = vsub.f32 1.0, %v1082
  %1088 = vrot.lane.b32.xlu0 %v1085, 64
  %v1089 = vpop.permute.xlu0 %1088
  %v1091 = vmul.f32 %v1086, %v1089
  %1092 = vrot.lane.b32.xlu0 %v1001, 64
  %v1093 = vpop.permute.xlu0 %1092
  %v1095 = vmul.f32 %v1082, %v1093
  %v1096 = vadd.f32 %v1091, %v1095
  %v1097 = vsub.f32 %v1096, %v1093
  %1099 = vrot.lane.b32.xlu0 %v1097, 64
  %v1100 = vpop.permute.xlu0 %1099
  %v1102 = vmul.f32 %v682, %v1100
  %v1103 = vadd.f32 %v1001, %v1102
  %v1105 = vsel %vm699, %v1103, 0
  %1107 = vmatprep.subr.mxu0 0.0
  %1108 = vmatpush1.msra.mxu0 0.0
  %1109 = vmatprep.subr.mxu0 0.0
  %1110 = vmatpush1.msra.mxu0 0.0
  %1111 = vmatprep.subr.mxu0 0.0
  %1112 = vmatpush1.msra.mxu0 0.0
  %1113 = vmatprep.subr.mxu0 0.0
  %1114 = vmatpush1.msra.mxu0 0.0
  %1115 = vmatprep.subr.mxu0 0.0
  %1116 = vmatpush1.msra.mxu0 0.0
  %1117 = vmatprep.subr.mxu0 0.0
  %1118 = vmatpush1.msra.mxu0 0.0
  %1119 = vmatprep.subr.mxu0 0.0
  %1120 = vmatpush1.msra.mxu0 0.0
  %1121 = vmatprep.subr.mxu0 0.0
  %1122 = vmatpush1.msra.mxu0 0.0
  %1123 = vmatprep.subr.mxu0 %v45
  %1124 = vmatpush1.msra.mxu0 %v44
  %1125 = vmatprep.subr.mxu0 %v43
  %1126 = vmatpush1.msra.mxu0 %v42
  %1127 = vmatprep.subr.mxu0 %v41
  %1128 = vmatpush1.msra.mxu0 %v40
  %1129 = vmatprep.subr.mxu0 %v39
  %1130 = vmatpush1.msra.mxu0 %v38
  %1131 = vmatprep.subr.mxu0 %v37
  %1132 = vmatpush1.msra.mxu0 %v36
  %1133 = vmatprep.subr.mxu0 %v35
  %1134 = vmatpush1.msra.mxu0 %v34
  %1135 = vmatprep.subr.mxu0 %v33
  %1136 = vmatpush1.msra.mxu0 %v32
  %1137 = vmatprep.subr.mxu0 %v31
  %1138 = vmatpush1.msra.mxu0 %v30
  %1139 = vmatprep.subr.mxu0 0.0
  %1140 = vmatpush2.msra.mxu0 0.0
  %1141 = vmatprep.subr.mxu0 0.0
  %1142 = vmatpush2.msra.mxu0 0.0
  %1143 = vmatprep.subr.mxu0 0.0
  %1144 = vmatpush2.msra.mxu0 0.0
  %1145 = vmatprep.subr.mxu0 0.0
  %1146 = vmatpush2.msra.mxu0 0.0
  %1147 = vmatprep.subr.mxu0 0.0
  %1148 = vmatpush2.msra.mxu0 0.0
  %1149 = vmatprep.subr.mxu0 0.0
  %1150 = vmatpush2.msra.mxu0 0.0
  %1151 = vmatprep.subr.mxu0 0.0
  %1152 = vmatpush2.msra.mxu0 0.0
  %1153 = vmatprep.subr.mxu0 0.0
  %1154 = vmatpush2.msra.mxu0 0.0
  %1155 = vmatprep.subr.mxu0 0.0
  %1156 = vmatpush2.msra.mxu0 0.0
  %1157 = vmatprep.subr.mxu0 0.0
  %1158 = vmatpush2.msra.mxu0 0.0
  %1159 = vmatprep.subr.mxu0 0.0
  %1160 = vmatpush2.msra.mxu0 0.0
  %1161 = vmatprep.subr.mxu0 0.0
  %1162 = vmatpush2.msra.mxu0 0.0
  %1163 = vmatprep.subr.mxu0 0.0
  %1164 = vmatpush2.msra.mxu0 0.0
  %1165 = vmatprep.subr.mxu0 0.0
  %1166 = vmatpush2.msra.mxu0 0.0
  %1167 = vmatprep.subr.mxu0 0.0
  %1168 = vmatpush2.msra.mxu0 0.0
  %1169 = vmatprep.subr.mxu0 0.0
  %1170 = vmatpush2.msra.mxu0 0.0
  %1171 = vmatprep.mubr.f32.mxu0 0.0
  %1172 = vmatmul.mubr.f32.gmra.mxu0 %v1105
  %v1173 = vpop.f32.mrf.mxu0
  %v1174 = vadd.f32 %v694, %v1173
  %v1175 = vpop.f32.mrf.mxu0
  %v1176 = vadd.f32 %v698, %v1175
  %1177 = vdwg.mxu0
  %v1178 = vadd.f32 %v444, %v1174
  %v1179 = vxor.u32 %v1178, 2147483648
  %v1180 = vmul.f32 %v1179, 1.442695
  %v1181 = vpow.pop %v1180
  %v1182 = vadd.f32 %v1181, 1.0
  %v1183 = vrcp.pop %v1182
  %v1184 = vmul.f32 1.0, %v1183
  %v1185 = vmul.f32 %v1184, %v1176
  %v1186 = vadd.f32 %v446, %v1185
  %v1187 = vtanh.pop %v1186
  %v1188 = vsub.f32 1.0, %v1184
  %1190 = vrot.lane.b32.xlu0 %v1187, 64
  %v1191 = vpop.permute.xlu0 %1190
  %v1193 = vmul.f32 %v1188, %v1191
  %1194 = vrot.lane.b32.xlu0 %v1103, 64
  %v1195 = vpop.permute.xlu0 %1194
  %v1197 = vmul.f32 %v1184, %v1195
  %v1198 = vadd.f32 %v1193, %v1197
  %v1199 = vsub.f32 %v1198, %v1195
  %1201 = vrot.lane.b32.xlu0 %v1199, 64
  %v1202 = vpop.permute.xlu0 %1201
  %v1204 = vmul.f32 %v684, %v1202
  %v1205 = vadd.f32 %v1103, %v1204
  %v1207 = vsel %vm699, %v1205, 0
  %1209 = vmatprep.subr.mxu0 0.0
  %1210 = vmatpush1.msra.mxu0 0.0
  %1211 = vmatprep.subr.mxu0 0.0
  %1212 = vmatpush1.msra.mxu0 0.0
  %1213 = vmatprep.subr.mxu0 0.0
  %1214 = vmatpush1.msra.mxu0 0.0
  %1215 = vmatprep.subr.mxu0 0.0
  %1216 = vmatpush1.msra.mxu0 0.0
  %1217 = vmatprep.subr.mxu0 0.0
  %1218 = vmatpush1.msra.mxu0 0.0
  %1219 = vmatprep.subr.mxu0 0.0
  %1220 = vmatpush1.msra.mxu0 0.0
  %1221 = vmatprep.subr.mxu0 0.0
  %1222 = vmatpush1.msra.mxu0 0.0
  %1223 = vmatprep.subr.mxu0 0.0
  %1224 = vmatpush1.msra.mxu0 0.0
  %1225 = vmatprep.subr.mxu0 %v45
  %1226 = vmatpush1.msra.mxu0 %v44
  %1227 = vmatprep.subr.mxu0 %v43
  %1228 = vmatpush1.msra.mxu0 %v42
  %1229 = vmatprep.subr.mxu0 %v41
  %1230 = vmatpush1.msra.mxu0 %v40
  %1231 = vmatprep.subr.mxu0 %v39
  %1232 = vmatpush1.msra.mxu0 %v38
  %1233 = vmatprep.subr.mxu0 %v37
  %1234 = vmatpush1.msra.mxu0 %v36
  %1235 = vmatprep.subr.mxu0 %v35
  %1236 = vmatpush1.msra.mxu0 %v34
  %1237 = vmatprep.subr.mxu0 %v33
  %1238 = vmatpush1.msra.mxu0 %v32
  %1239 = vmatprep.subr.mxu0 %v31
  %1240 = vmatpush1.msra.mxu0 %v30
  %1241 = vmatprep.subr.mxu0 0.0
  %1242 = vmatpush2.msra.mxu0 0.0
  %1243 = vmatprep.subr.mxu0 0.0
  %1244 = vmatpush2.msra.mxu0 0.0
  %1245 = vmatprep.subr.mxu0 0.0
  %1246 = vmatpush2.msra.mxu0 0.0
  %1247 = vmatprep.subr.mxu0 0.0
  %1248 = vmatpush2.msra.mxu0 0.0
  %1249 = vmatprep.subr.mxu0 0.0
  %1250 = vmatpush2.msra.mxu0 0.0
  %1251 = vmatprep.subr.mxu0 0.0
  %1252 = vmatpush2.msra.mxu0 0.0
  %1253 = vmatprep.subr.mxu0 0.0
  %1254 = vmatpush2.msra.mxu0 0.0
  %1255 = vmatprep.subr.mxu0 0.0
  %1256 = vmatpush2.msra.mxu0 0.0
  %1257 = vmatprep.subr.mxu0 0.0
  %1258 = vmatpush2.msra.mxu0 0.0
  %1259 = vmatprep.subr.mxu0 0.0
  %1260 = vmatpush2.msra.mxu0 0.0
  %1261 = vmatprep.subr.mxu0 0.0
  %1262 = vmatpush2.msra.mxu0 0.0
  %1263 = vmatprep.subr.mxu0 0.0
  %1264 = vmatpush2.msra.mxu0 0.0
  %1265 = vmatprep.subr.mxu0 0.0
  %1266 = vmatpush2.msra.mxu0 0.0
  %1267 = vmatprep.subr.mxu0 0.0
  %1268 = vmatpush2.msra.mxu0 0.0
  %1269 = vmatprep.subr.mxu0 0.0
  %1270 = vmatpush2.msra.mxu0 0.0
  %1271 = vmatprep.subr.mxu0 0.0
  %1272 = vmatpush2.msra.mxu0 0.0
  %1273 = vmatprep.mubr.f32.mxu0 0.0
  %1274 = vmatmul.mubr.f32.gmra.mxu0 %v1207
  %v1275 = vpop.f32.mrf.mxu0
  %v1276 = vadd.f32 %v694, %v1275
  %v1277 = vpop.f32.mrf.mxu0
  %v1278 = vadd.f32 %v698, %v1277
  %1279 = vdwg.mxu0
  %v1280 = vadd.f32 %v520, %v1276
  %v1281 = vxor.u32 %v1280, 2147483648
  %v1282 = vmul.f32 %v1281, 1.442695
  %v1283 = vpow.pop %v1282
  %v1284 = vadd.f32 %v1283, 1.0
  %v1285 = vrcp.pop %v1284
  %v1286 = vmul.f32 1.0, %v1285
  %v1287 = vmul.f32 %v1286, %v1278
  %v1288 = vadd.f32 %v522, %v1287
  %v1289 = vtanh.pop %v1288
  %v1290 = vsub.f32 1.0, %v1286
  %1292 = vrot.lane.b32.xlu0 %v1289, 64
  %v1293 = vpop.permute.xlu0 %1292
  %v1295 = vmul.f32 %v1290, %v1293
  %1296 = vrot.lane.b32.xlu0 %v1205, 64
  %v1297 = vpop.permute.xlu0 %1296
  %v1299 = vmul.f32 %v1286, %v1297
  %v1300 = vadd.f32 %v1295, %v1299
  %v1301 = vsub.f32 %v1300, %v1297
  %1303 = vrot.lane.b32.xlu0 %v1301, 64
  %v1304 = vpop.permute.xlu0 %1303
  %v1306 = vmul.f32 %v686, %v1304
  %v1307 = vadd.f32 %v1205, %v1306
  %v1309 = vsel %vm699, %v1307, 0
  %1311 = vmatprep.subr.mxu0 0.0
  %1312 = vmatpush1.msra.mxu0 0.0
  %1313 = vmatprep.subr.mxu0 0.0
  %1314 = vmatpush1.msra.mxu0 0.0
  %1315 = vmatprep.subr.mxu0 0.0
  %1316 = vmatpush1.msra.mxu0 0.0
  %1317 = vmatprep.subr.mxu0 0.0
  %1318 = vmatpush1.msra.mxu0 0.0
  %1319 = vmatprep.subr.mxu0 0.0
  %1320 = vmatpush1.msra.mxu0 0.0
  %1321 = vmatprep.subr.mxu0 0.0
  %1322 = vmatpush1.msra.mxu0 0.0
  %1323 = vmatprep.subr.mxu0 0.0
  %1324 = vmatpush1.msra.mxu0 0.0
  %1325 = vmatprep.subr.mxu0 0.0
  %1326 = vmatpush1.msra.mxu0 0.0
  %1327 = vmatprep.subr.mxu0 %v45
  %1328 = vmatpush1.msra.mxu0 %v44
  %1329 = vmatprep.subr.mxu0 %v43
  %1330 = vmatpush1.msra.mxu0 %v42
  %1331 = vmatprep.subr.mxu0 %v41
  %1332 = vmatpush1.msra.mxu0 %v40
  %1333 = vmatprep.subr.mxu0 %v39
  %1334 = vmatpush1.msra.mxu0 %v38
  %1335 = vmatprep.subr.mxu0 %v37
  %1336 = vmatpush1.msra.mxu0 %v36
  %1337 = vmatprep.subr.mxu0 %v35
  %1338 = vmatpush1.msra.mxu0 %v34
  %1339 = vmatprep.subr.mxu0 %v33
  %1340 = vmatpush1.msra.mxu0 %v32
  %1341 = vmatprep.subr.mxu0 %v31
  %1342 = vmatpush1.msra.mxu0 %v30
  %1343 = vmatprep.subr.mxu0 0.0
  %1344 = vmatpush2.msra.mxu0 0.0
  %1345 = vmatprep.subr.mxu0 0.0
  %1346 = vmatpush2.msra.mxu0 0.0
  %1347 = vmatprep.subr.mxu0 0.0
  %1348 = vmatpush2.msra.mxu0 0.0
  %1349 = vmatprep.subr.mxu0 0.0
  %1350 = vmatpush2.msra.mxu0 0.0
  %1351 = vmatprep.subr.mxu0 0.0
  %1352 = vmatpush2.msra.mxu0 0.0
  %1353 = vmatprep.subr.mxu0 0.0
  %1354 = vmatpush2.msra.mxu0 0.0
  %1355 = vmatprep.subr.mxu0 0.0
  %1356 = vmatpush2.msra.mxu0 0.0
  %1357 = vmatprep.subr.mxu0 0.0
  %1358 = vmatpush2.msra.mxu0 0.0
  %1359 = vmatprep.subr.mxu0 0.0
  %1360 = vmatpush2.msra.mxu0 0.0
  %1361 = vmatprep.subr.mxu0 0.0
  %1362 = vmatpush2.msra.mxu0 0.0
  %1363 = vmatprep.subr.mxu0 0.0
  %1364 = vmatpush2.msra.mxu0 0.0
  %1365 = vmatprep.subr.mxu0 0.0
  %1366 = vmatpush2.msra.mxu0 0.0
  %1367 = vmatprep.subr.mxu0 0.0
  %1368 = vmatpush2.msra.mxu0 0.0
  %1369 = vmatprep.subr.mxu0 0.0
  %1370 = vmatpush2.msra.mxu0 0.0
  %1371 = vmatprep.subr.mxu0 0.0
  %1372 = vmatpush2.msra.mxu0 0.0
  %1373 = vmatprep.subr.mxu0 0.0
  %1374 = vmatpush2.msra.mxu0 0.0
  %1375 = vmatprep.mubr.f32.mxu0 0.0
  %1376 = vmatmul.mubr.f32.gmra.mxu0 %v1309
  %v1377 = vpop.f32.mrf.mxu0
  %v1378 = vadd.f32 %v694, %v1377
  %v1379 = vpop.f32.mrf.mxu0
  %v1380 = vadd.f32 %v698, %v1379
  %1381 = vdwg.mxu0
  %v1382 = vadd.f32 %v596, %v1378
  %v1383 = vxor.u32 %v1382, 2147483648
  %v1384 = vmul.f32 %v1383, 1.442695
  %v1385 = vpow.pop %v1384
  %v1386 = vadd.f32 %v1385, 1.0
  %v1387 = vrcp.pop %v1386
  %v1388 = vmul.f32 1.0, %v1387
  %v1389 = vmul.f32 %v1388, %v1380
  %v1390 = vadd.f32 %v598, %v1389
  %v1391 = vtanh.pop %v1390
  %v1392 = vsub.f32 1.0, %v1388
  %1394 = vrot.lane.b32.xlu0 %v1391, 64
  %v1395 = vpop.permute.xlu0 %1394
  %v1397 = vmul.f32 %v1392, %v1395
  %1398 = vrot.lane.b32.xlu0 %v1307, 64
  %v1399 = vpop.permute.xlu0 %1398
  %v1401 = vmul.f32 %v1388, %v1399
  %v1402 = vadd.f32 %v1397, %v1401
  %v1403 = vsub.f32 %v1402, %v1399
  %1405 = vrot.lane.b32.xlu0 %v1403, 64
  %v1406 = vpop.permute.xlu0 %1405
  %v1408 = vmul.f32 %v688, %v1406
  %v1409 = vadd.f32 %v1307, %v1408
  %v1411 = vsel %vm699, %v1409, 0
  %1413 = vmatprep.subr.mxu0 0.0
  %1414 = vmatpush1.msra.mxu0 0.0
  %1415 = vmatprep.subr.mxu0 0.0
  %1416 = vmatpush1.msra.mxu0 0.0
  %1417 = vmatprep.subr.mxu0 0.0
  %1418 = vmatpush1.msra.mxu0 0.0
  %1419 = vmatprep.subr.mxu0 0.0
  %1420 = vmatpush1.msra.mxu0 0.0
  %1421 = vmatprep.subr.mxu0 0.0
  %1422 = vmatpush1.msra.mxu0 0.0
  %1423 = vmatprep.subr.mxu0 0.0
  %1424 = vmatpush1.msra.mxu0 0.0
  %1425 = vmatprep.subr.mxu0 0.0
  %1426 = vmatpush1.msra.mxu0 0.0
  %1427 = vmatprep.subr.mxu0 0.0
  %1428 = vmatpush1.msra.mxu0 0.0
  %1429 = vmatprep.subr.mxu0 %v45
  %1430 = vmatpush1.msra.mxu0 %v44
  %1431 = vmatprep.subr.mxu0 %v43
  %1432 = vmatpush1.msra.mxu0 %v42
  %1433 = vmatprep.subr.mxu0 %v41
  %1434 = vmatpush1.msra.mxu0 %v40
  %1435 = vmatprep.subr.mxu0 %v39
  %1436 = vmatpush1.msra.mxu0 %v38
  %1437 = vmatprep.subr.mxu0 %v37
  %1438 = vmatpush1.msra.mxu0 %v36
  %1439 = vmatprep.subr.mxu0 %v35
  %1440 = vmatpush1.msra.mxu0 %v34
  %1441 = vmatprep.subr.mxu0 %v33
  %1442 = vmatpush1.msra.mxu0 %v32
  %1443 = vmatprep.subr.mxu0 %v31
  %1444 = vmatpush1.msra.mxu0 %v30
  %1445 = vmatprep.subr.mxu0 0.0
  %1446 = vmatpush2.msra.mxu0 0.0
  %1447 = vmatprep.subr.mxu0 0.0
  %1448 = vmatpush2.msra.mxu0 0.0
  %1449 = vmatprep.subr.mxu0 0.0
  %1450 = vmatpush2.msra.mxu0 0.0
  %1451 = vmatprep.subr.mxu0 0.0
  %1452 = vmatpush2.msra.mxu0 0.0
  %1453 = vmatprep.subr.mxu0 0.0
  %1454 = vmatpush2.msra.mxu0 0.0
  %1455 = vmatprep.subr.mxu0 0.0
  %1456 = vmatpush2.msra.mxu0 0.0
  %1457 = vmatprep.subr.mxu0 0.0
  %1458 = vmatpush2.msra.mxu0 0.0
  %1459 = vmatprep.subr.mxu0 0.0
  %1460 = vmatpush2.msra.mxu0 0.0
  %1461 = vmatprep.subr.mxu0 0.0
  %1462 = vmatpush2.msra.mxu0 0.0
  %1463 = vmatprep.subr.mxu0 0.0
  %1464 = vmatpush2.msra.mxu0 0.0
  %1465 = vmatprep.subr.mxu0 0.0
  %1466 = vmatpush2.msra.mxu0 0.0
  %1467 = vmatprep.subr.mxu0 0.0
  %1468 = vmatpush2.msra.mxu0 0.0
  %1469 = vmatprep.subr.mxu0 0.0
  %1470 = vmatpush2.msra.mxu0 0.0
  %1471 = vmatprep.subr.mxu0 0.0
  %1472 = vmatpush2.msra.mxu0 0.0
  %1473 = vmatprep.subr.mxu0 0.0
  %1474 = vmatpush2.msra.mxu0 0.0
  %1475 = vmatprep.subr.mxu0 0.0
  %1476 = vmatpush2.msra.mxu0 0.0
  %1477 = vmatprep.mubr.f32.mxu0 0.0
  %1478 = vmatmul.mubr.f32.gmra.mxu0 %v1411
  %v1479 = vpop.f32.mrf.mxu0
  %v1480 = vadd.f32 %v694, %v1479
  %v1481 = vpop.f32.mrf.mxu0
  %v1482 = vadd.f32 %v698, %v1481
  %1483 = vdwg.mxu0
  %v1484 = vadd.f32 %v672, %v1480
  %v1485 = vxor.u32 %v1484, 2147483648
  %v1486 = vmul.f32 %v1485, 1.442695
  %v1487 = vpow.pop %v1486
  %v1488 = vadd.f32 %v1487, 1.0
  %v1489 = vrcp.pop %v1488
  %v1490 = vmul.f32 1.0, %v1489
  %v1491 = vmul.f32 %v1490, %v1482
  %v1492 = vadd.f32 %v674, %v1491
  %v1493 = vtanh.pop %v1492
  %v1494 = vsub.f32 1.0, %v1490
  %1496 = vrot.lane.b32.xlu0 %v1493, 64
  %v1497 = vpop.permute.xlu0 %1496
  %v1499 = vmul.f32 %v1494, %v1497
  %1500 = vrot.lane.b32.xlu0 %v1409, 64
  %v1501 = vpop.permute.xlu0 %1500
  %v1503 = vmul.f32 %v1490, %v1501
  %v1504 = vadd.f32 %v1499, %v1503
  %v1505 = vsub.f32 %v1504, %v1501
  %1507 = vrot.lane.b32.xlu0 %v1505, 64
  %v1508 = vpop.permute.xlu0 %1507
  %v1510 = vmul.f32 %v690, %v1508
  %v1511 = vadd.f32 %v1409, %v1510
  %v1512 = vlaneseq
  %v1513 = vshrl.u32 %v1512, 7
  %v1514 = vsub.s32 6, %v1513
  %v1515 = vrot.slane %v56, %v1514
  %v1517 = vsel %vm699, %v1511, 0
  %1519 = vmatprep.subr.mxu0 0.0
  %1520 = vmatpush1.msra.mxu0 0.0
  %1521 = vmatprep.subr.mxu0 0.0
  %1522 = vmatpush1.msra.mxu0 0.0
  %1523 = vmatprep.subr.mxu0 0.0
  %1524 = vmatpush1.msra.mxu0 0.0
  %1525 = vmatprep.subr.mxu0 0.0
  %1526 = vmatpush1.msra.mxu0 0.0
  %1527 = vmatprep.subr.mxu0 0.0
  %1528 = vmatpush1.msra.mxu0 0.0
  %1529 = vmatprep.subr.mxu0 0.0
  %1530 = vmatpush1.msra.mxu0 0.0
  %1531 = vmatprep.subr.mxu0 0.0
  %1532 = vmatpush1.msra.mxu0 0.0
  %1533 = vmatprep.subr.mxu0 0.0
  %1534 = vmatpush1.msra.mxu0 0.0
  %1535 = vmatprep.subr.mxu0 0.0
  %1536 = vmatpush1.msra.mxu0 %v55
  %1537 = vmatprep.subr.mxu0 0.0
  %1538 = vmatpush1.msra.mxu0 %v54
  %1539 = vmatprep.subr.mxu0 0.0
  %1540 = vmatpush1.msra.mxu0 %v53
  %1541 = vmatprep.subr.mxu0 0.0
  %1542 = vmatpush1.msra.mxu0 %v52
  %1543 = vmatprep.subr.mxu0 0.0
  %1544 = vmatpush1.msra.mxu0 %v51
  %1545 = vmatprep.subr.mxu0 0.0
  %1546 = vmatpush1.msra.mxu0 %v50
  %1547 = vmatprep.subr.mxu0 0.0
  %1548 = vmatpush1.msra.mxu0 %v49
  %1549 = vmatprep.subr.mxu0 0.0
  %1550 = vmatpush1.msra.mxu0 %v48
  %1551 = vmatprep.subr.mxu0 0.0
  %1552 = vmatpush2.msra.mxu0 0.0
  %1553 = vmatprep.subr.mxu0 0.0
  %1554 = vmatpush2.msra.mxu0 0.0
  %1555 = vmatprep.subr.mxu0 0.0
  %1556 = vmatpush2.msra.mxu0 0.0
  %1557 = vmatprep.subr.mxu0 0.0
  %1558 = vmatpush2.msra.mxu0 0.0
  %1559 = vmatprep.subr.mxu0 0.0
  %1560 = vmatpush2.msra.mxu0 0.0
  %1561 = vmatprep.subr.mxu0 0.0
  %1562 = vmatpush2.msra.mxu0 0.0
  %1563 = vmatprep.subr.mxu0 0.0
  %1564 = vmatpush2.msra.mxu0 0.0
  %1565 = vmatprep.subr.mxu0 0.0
  %1566 = vmatpush2.msra.mxu0 0.0
  %1567 = vmatprep.subr.mxu0 0.0
  %1568 = vmatpush2.msra.mxu0 0.0
  %1569 = vmatprep.subr.mxu0 0.0
  %1570 = vmatpush2.msra.mxu0 0.0
  %1571 = vmatprep.subr.mxu0 0.0
  %1572 = vmatpush2.msra.mxu0 0.0
  %1573 = vmatprep.subr.mxu0 0.0
  %1574 = vmatpush2.msra.mxu0 0.0
  %1575 = vmatprep.subr.mxu0 0.0
  %1576 = vmatpush2.msra.mxu0 0.0
  %1577 = vmatprep.subr.mxu0 0.0
  %1578 = vmatpush2.msra.mxu0 0.0
  %1579 = vmatprep.subr.mxu0 0.0
  %1580 = vmatpush2.msra.mxu0 0.0
  %1581 = vmatprep.subr.mxu0 0.0
  %1582 = vmatpush2.msra.mxu0 0.0
  %1583 = vmatprep.mubr.f32.mxu0 0.0
  %1584 = vmatmul.mubr.f32.gmra.mxu0 %v1517
  %v1585 = vpop.f32.mrf.mxu0
  %v1586 = vadd.f32 %v1515, %v1585
  %v1587 = vpop.f32.mrf.mxu0
  %1588 = vdwg.mxu0
  %v1589 = vld [vmem:[%s2] sm:$0x3]
  %v1590 = vtanh.pop %v1589
  %vm1591 = vcmask 48128
  %v1593 = vsel %vm1591, %v1590, 0
  %vm1595 = vcmask 1045504
  %v1597 = vsel %vm1595, %v56, 0
  %1599 = vmatprep.subr.mxu0 0.0
  %1600 = vmatpush1.msra.mxu0 0.0
  %1601 = vmatprep.subr.mxu0 0.0
  %1602 = vmatpush1.msra.mxu0 0.0
  %1603 = vmatprep.subr.mxu0 0.0
  %1604 = vmatpush1.msra.mxu0 0.0
  %1605 = vmatprep.subr.mxu0 0.0
  %1606 = vmatpush1.msra.mxu0 0.0
  %1607 = vmatprep.subr.mxu0 0.0
  %1608 = vmatpush1.msra.mxu0 0.0
  %1609 = vmatprep.subr.mxu0 0.0
  %1610 = vmatpush1.msra.mxu0 0.0
  %1611 = vmatprep.subr.mxu0 0.0
  %1612 = vmatpush1.msra.mxu0 0.0
  %1613 = vmatprep.subr.mxu0 0.0
  %1614 = vmatpush1.msra.mxu0 0.0
  %1615 = vmatprep.subr.mxu0 0.0
  %1616 = vmatpush1.msra.mxu0 0.0
  %1617 = vmatprep.subr.mxu0 0.0
  %1618 = vmatpush1.msra.mxu0 0.0
  %1619 = vmatprep.subr.mxu0 0.0
  %1620 = vmatpush1.msra.mxu0 0.0
  %1621 = vmatprep.subr.mxu0 0.0
  %1622 = vmatpush1.msra.mxu0 0.0
  %1623 = vmatprep.subr.mxu0 0.0
  %1624 = vmatpush1.msra.mxu0 0.0
  %1625 = vmatprep.subr.mxu0 0.0
  %1626 = vmatpush1.msra.mxu0 0.0
  %1627 = vmatprep.subr.mxu0 0.0
  %1628 = vmatpush1.msra.mxu0 0.0
  %1629 = vmatprep.subr.mxu0 0.0
  %1630 = vmatpush1.msra.mxu0 %v1597
  %1631 = vmatprep.subr.mxu0 0.0
  %1632 = vmatpush2.msra.mxu0 0.0
  %1633 = vmatprep.subr.mxu0 0.0
  %1634 = vmatpush2.msra.mxu0 0.0
  %1635 = vmatprep.subr.mxu0 0.0
  %1636 = vmatpush2.msra.mxu0 0.0
  %1637 = vmatprep.subr.mxu0 0.0
  %1638 = vmatpush2.msra.mxu0 0.0
  %1639 = vmatprep.subr.mxu0 0.0
  %1640 = vmatpush2.msra.mxu0 0.0
  %1641 = vmatprep.subr.mxu0 0.0
  %1642 = vmatpush2.msra.mxu0 0.0
  %1643 = vmatprep.subr.mxu0 0.0
  %1644 = vmatpush2.msra.mxu0 0.0
  %1645 = vmatprep.subr.mxu0 0.0
  %1646 = vmatpush2.msra.mxu0 0.0
  %1647 = vmatprep.subr.mxu0 0.0
  %1648 = vmatpush2.msra.mxu0 0.0
  %1649 = vmatprep.subr.mxu0 0.0
  %1650 = vmatpush2.msra.mxu0 0.0
  %1651 = vmatprep.subr.mxu0 0.0
  %1652 = vmatpush2.msra.mxu0 0.0
  %1653 = vmatprep.subr.mxu0 0.0
  %1654 = vmatpush2.msra.mxu0 0.0
  %1655 = vmatprep.subr.mxu0 0.0
  %1656 = vmatpush2.msra.mxu0 0.0
  %1657 = vmatprep.subr.mxu0 0.0
  %1658 = vmatpush2.msra.mxu0 0.0
  %1659 = vmatprep.subr.mxu0 0.0
  %1660 = vmatpush2.msra.mxu0 0.0
  %1661 = vmatprep.subr.mxu0 0.0
  %1662 = vmatpush2.msra.mxu0 0.0
  %1663 = vmatprep.mubr.f32.mxu0 0.0
  %1664 = vmatmul.mubr.f32.gmra.mxu0 %v1593
  %v1665 = vpop.f32.mrf.mxu0
  %v1666 = vadd.f32 0.0, %v1665
  %v1667 = vpop.f32.mrf.mxu0
  %1668 = vdwg.mxu0
  %v1669 = vadd.f32 %v1586, %v1666
  %v1670 = vmax.f32 %v1669, 0.0
  %v1671 = vtanh.pop %v1670
  %v1672 = vlaneseq
  %v1673 = vshrl.u32 %v1672, 7
  %v1674 = vsub.s32 0, %v1673
  %v1675 = vrot.slane %v59, %v1674
  %vm1676 = vcmask 130048
  %v1678 = vsel %vm1676, %v1671, 0
  %1680 = vmatprep.subr.mxu0 0.0
  %1681 = vmatpush1.msra.mxu0 0.0
  %1682 = vmatprep.subr.mxu0 0.0
  %1683 = vmatpush1.msra.mxu0 0.0
  %1684 = vmatprep.subr.mxu0 0.0
  %1685 = vmatpush1.msra.mxu0 0.0
  %1686 = vmatprep.subr.mxu0 0.0
  %1687 = vmatpush1.msra.mxu0 0.0
  %1688 = vmatprep.subr.mxu0 0.0
  %1689 = vmatpush1.msra.mxu0 0.0
  %1690 = vmatprep.subr.mxu0 0.0
  %1691 = vmatpush1.msra.mxu0 0.0
  %1692 = vmatprep.subr.mxu0 0.0
  %1693 = vmatpush1.msra.mxu0 0.0
  %1694 = vmatprep.subr.mxu0 0.0
  %1695 = vmatpush1.msra.mxu0 0.0
  %1696 = vmatprep.subr.mxu0 0.0
  %1697 = vmatpush1.msra.mxu0 0.0
  %1698 = vmatprep.subr.mxu0 0.0
  %1699 = vmatpush1.msra.mxu0 0.0
  %1700 = vmatprep.subr.mxu0 0.0
  %1701 = vmatpush1.msra.mxu0 0.0
  %1702 = vmatprep.subr.mxu0 0.0
  %1703 = vmatpush1.msra.mxu0 0.0
  %1704 = vmatprep.subr.mxu0 0.0
  %1705 = vmatpush1.msra.mxu0 0.0
  %1706 = vmatprep.subr.mxu0 0.0
  %1707 = vmatpush1.msra.mxu0 0.0
  %1708 = vmatprep.subr.mxu0 0.0
  %1709 = vmatpush1.msra.mxu0 %v58
  %1710 = vmatprep.subr.mxu0 0.0
  %1711 = vmatpush1.msra.mxu0 %v57
  %1712 = vmatprep.subr.mxu0 0.0
  %1713 = vmatpush2.msra.mxu0 0.0
  %1714 = vmatprep.subr.mxu0 0.0
  %1715 = vmatpush2.msra.mxu0 0.0
  %1716 = vmatprep.subr.mxu0 0.0
  %1717 = vmatpush2.msra.mxu0 0.0
  %1718 = vmatprep.subr.mxu0 0.0
  %1719 = vmatpush2.msra.mxu0 0.0
  %1720 = vmatprep.subr.mxu0 0.0
  %1721 = vmatpush2.msra.mxu0 0.0
  %1722 = vmatprep.subr.mxu0 0.0
  %1723 = vmatpush2.msra.mxu0 0.0
  %1724 = vmatprep.subr.mxu0 0.0
  %1725 = vmatpush2.msra.mxu0 0.0
  %1726 = vmatprep.subr.mxu0 0.0
  %1727 = vmatpush2.msra.mxu0 0.0
  %1728 = vmatprep.subr.mxu0 0.0
  %1729 = vmatpush2.msra.mxu0 0.0
  %1730 = vmatprep.subr.mxu0 0.0
  %1731 = vmatpush2.msra.mxu0 0.0
  %1732 = vmatprep.subr.mxu0 0.0
  %1733 = vmatpush2.msra.mxu0 0.0
  %1734 = vmatprep.subr.mxu0 0.0
  %1735 = vmatpush2.msra.mxu0 0.0
  %1736 = vmatprep.subr.mxu0 0.0
  %1737 = vmatpush2.msra.mxu0 0.0
  %1738 = vmatprep.subr.mxu0 0.0
  %1739 = vmatpush2.msra.mxu0 0.0
  %1740 = vmatprep.subr.mxu0 0.0
  %1741 = vmatpush2.msra.mxu0 0.0
  %1742 = vmatprep.subr.mxu0 0.0
  %1743 = vmatpush2.msra.mxu0 0.0
  %1744 = vmatprep.mubr.f32.mxu0 0.0
  %1745 = vmatmul.mubr.f32.gmra.mxu0 %v1678
  %v1746 = vpop.f32.mrf.mxu0
  %v1747 = vadd.f32 %v1675, %v1746
  %v1748 = vpop.f32.mrf.mxu0
  %1749 = vdwg.mxu0
  %vm1750 = vcmask 1024
  %1751 = vst.msk [vmem:[%s7] sm:$0x3] %vm1750, %v1747
  // Predicated region
  $region30: #{gru_regr_forward.1} parent=0 // pred_check
    _
  $region31: #{gru_regr_forward.1} parent=0 // pred_check_branch
    %1753 = sbr.rel (0) target = $region33
  $region32: #{gru_regr_forward.1} parent=0 // pred_region
    _
  $region33: #{gru_regr_forward.1} parent=0 // pred_fallthru
    _
  // Predicated region
  $region34: #{gru_regr_forward.1} parent=0 // pred_check
    _
  $region35: #{gru_regr_forward.1} parent=0 // pred_check_branch
    %1755 = sbr.rel (0) target = $region37
  $region36: #{gru_regr_forward.1} parent=0 // pred_region
    _
  $region37: #{gru_regr_forward.1} parent=0 // pred_fallthru
    _

</llo_original>
